<compile_context>
chip_gen: v7x
topology: tpu7x:2x2x1
jax: 0.10.0
libtpu: 0.0.40
codegen_flags: <defaults>
</compile_context>

<pallas_src>
import functools

import jax
import jax.numpy as jnp
from jax.experimental import pallas as pl
from jax.experimental.pallas import tpu as pltpu

# MLP layer sizes (matches QL.__init__)
LAYER_DIMS = [65, 128, 256, 512, 256, 64, 1]
F_PAD = 128  # input feature dim zero-padded 65 -> 128


def _ql_kernel(x_ref,
               w0_ref, b0_ref,
               w1_ref, b1_ref,
               w2_ref, b2_ref,
               w3_ref, b3_ref,
               w4_ref, b4_ref,
               w5_ref, b5_ref,
               o_ref):
    """Fused 6-layer MLP forward for one batch tile."""
    h = x_ref[...]  # (TB, 128) float32 (zero-padded features)

    def linear_relu(h, w_ref, b_ref):
        # bf16 operands on the MXU, f32 accumulation; bias + ReLU in f32 (VPU).
        y = jnp.dot(h.astype(jnp.bfloat16), w_ref[...],
                    preferred_element_type=jnp.float32)
        return jnp.maximum(y + b_ref[...], 0.0)

    h = linear_relu(h, w0_ref, b0_ref)   # (TB, 128)
    h = linear_relu(h, w1_ref, b1_ref)   # (TB, 256)
    h = linear_relu(h, w2_ref, b2_ref)   # (TB, 512)
    h = linear_relu(h, w3_ref, b3_ref)   # (TB, 256)
    h = linear_relu(h, w4_ref, b4_ref)   # (TB, 64)

    # Final 64 -> 1 layer as a VPU multiply + lane reduction (skips an N=1
    # MXU matmul that would waste a full MXU push/pop per tile).
    w5 = w5_ref[...]                                            # (1, 64) f32
    y = jnp.sum(h * w5, axis=-1, keepdims=True) + b5_ref[...]   # (TB, 1) f32
    o_ref[...] = y.astype(o_ref.dtype)


@functools.partial(jax.jit, static_argnames=("batch_tile",))
def ql_forward(x, params, *, batch_tile=256):
    """Run the fused QL MLP. x: (B, 65) float32. Returns (B, 1) float32."""
    B, F = x.shape
    assert F == LAYER_DIMS[0]
    n_tiles = -(-B // batch_tile)          # ceil-div
    B_pad = n_tiles * batch_tile

    # Zero-pad batch to a tile multiple and features 65 -> 128.
    x_p = jnp.pad(x.astype(jnp.float32), ((0, B_pad - B), (0, F_PAD - F)))

    flat_args = [x_p]
    in_specs = [pl.BlockSpec((batch_tile, F_PAD), lambda i: (i, 0))]

    # Hidden layers 0..4: bf16 weights (MXU operands), f32 biases.
    # Layer 0's weight rows are zero-padded to match the padded feature dim.
    for li in range(5):
        w, b = params[li]
        if li == 0:
            w = jnp.pad(w, ((0, F_PAD - w.shape[0]), (0, 0)))
        w = w.astype(jnp.bfloat16)
        b = b.astype(jnp.float32)
        flat_args += [w, b]
        # Whole-array blocks; constant index_map -> DMA'd once, kept resident.
        in_specs += [pl.BlockSpec(w.shape, lambda i: (0, 0)),
                     pl.BlockSpec(b.shape, lambda i: (0, 0))]

    # Final 64->1 layer stays f32: it runs as a VPU multiply + reduce.
    w5, b5 = params[5]
    w5_row = w5.reshape(1, LAYER_DIMS[5]).astype(jnp.float32)   # (1, 64)
    b5_s = b5.reshape(1, 1).astype(jnp.float32)                 # (1, 1)
    flat_args += [w5_row, b5_s]
    in_specs += [pl.BlockSpec(w5_row.shape, lambda i: (0, 0)),
                 pl.BlockSpec(b5_s.shape, lambda i: (0, 0))]

    out_specs = pl.BlockSpec((batch_tile, 1), lambda i: (i, 0))

    out = pl.pallas_call(
        _ql_kernel,
        out_shape=jax.ShapeDtypeStruct((B_pad, 1), jnp.float32),
        grid_spec=pltpu.PrefetchScalarGridSpec(
            num_scalar_prefetch=0,
            grid=(n_tiles,),
            in_specs=in_specs,
            out_specs=out_specs,
        ),
        compiler_params=pltpu.CompilerParams(
            dimension_semantics=("parallel",),
        ),
    )(*flat_args)

    return out[:B]


def init_ql_params(key):
    """Deterministic parameters with PyTorch-style Linear init bounds."""
    params = []
    for idx in range(len(LAYER_DIMS) - 1):
        fan_in, fan_out = LAYER_DIMS[idx], LAYER_DIMS[idx + 1]
        key, kw, kb = jax.random.split(key, 3)
        bound = 1.0 / (fan_in ** 0.5)
        # Stored as (in, out) so the kernel does x @ W (== x @ W_pt.T).
        w = jax.random.uniform(kw, (fan_in, fan_out), jnp.float32,
                               minval=-bound, maxval=bound)
        b = jax.random.uniform(kb, (1, fan_out), jnp.float32,
                               minval=-bound, maxval=bound)
        params.append((w, b))
    return params


def ql_forward_ref(x, params):
    """Plain-JAX f32 reference for correctness checking."""
    h = x
    for i, (w, b) in enumerate(params):
        h = h @ w + b
        if i < len(params) - 1:
            h = jnp.maximum(h, 0.0)
    return h


def ql_forward_ref_matched(x, params):
    """Plain-JAX reference mirroring the kernel's precision (bf16 MXU operands,
    f32 accumulation; final layer in f32)."""
    h = x.astype(jnp.float32)
    for (w, b) in params[:-1]:
        h = jnp.dot(h.astype(jnp.bfloat16), w.astype(jnp.bfloat16),
                    preferred_element_type=jnp.float32) + b
        h = jnp.maximum(h, 0.0)
    w5, b5 = params[-1]
    return h @ w5 + b5


if __name__ == "__main__":
    key = jax.random.PRNGKey(0)
    key_p, key_x = jax.random.split(key)

    params = init_ql_params(key_p)

    # Small batch of board states: 64 board cells + 1 turn indicator = 65 features.
    B = 8
    x = jax.random.uniform(key_x, (B, 65), jnp.float32, minval=-1.0, maxval=1.0)

    out = ql_forward(x, params, batch_tile=256)
    out = jax.block_until_ready(out)

    ref_f32 = ql_forward_ref(x, params)
    ref_matched = ql_forward_ref_matched(x, params)

    assert out.shape == (B, 1)
    assert jnp.allclose(out, ref_matched, atol=1e-2, rtol=1e-2), \
        "mismatch vs matched-precision reference"
    assert jnp.allclose(out, ref_f32, atol=5e-2, rtol=5e-2), \
        "mismatch vs f32 reference"

    print("KERNEL_OK")
</pallas_src>

<mosaic_0001>
module attributes {stable_mosaic.version = 11 : i64} {
  func.func @_ql_kernel(%arg0: i32, %arg1: memref<256x128xf32, #tpu.memory_space<vmem>>, %arg2: memref<128x128xbf16, #tpu.memory_space<vmem>>, %arg3: memref<1x128xf32, #tpu.memory_space<vmem>>, %arg4: memref<128x256xbf16, #tpu.memory_space<vmem>>, %arg5: memref<1x256xf32, #tpu.memory_space<vmem>>, %arg6: memref<256x512xbf16, #tpu.memory_space<vmem>>, %arg7: memref<1x512xf32, #tpu.memory_space<vmem>>, %arg8: memref<512x256xbf16, #tpu.memory_space<vmem>>, %arg9: memref<1x256xf32, #tpu.memory_space<vmem>>, %arg10: memref<256x64xbf16, #tpu.memory_space<vmem>>, %arg11: memref<1x64xf32, #tpu.memory_space<vmem>>, %arg12: memref<1x64xf32, #tpu.memory_space<vmem>>, %arg13: memref<1x1xf32, #tpu.memory_space<vmem>>, %arg14: memref<256x1xf32, #tpu.memory_space<vmem>>) attributes {dimension_semantics = [#tpu.dimension_semantics<parallel>], iteration_bounds = array<i64: 1>, scalar_prefetch = 0 : i64, scratch_operands = 0 : i64, tpu.core_type = #tpu.core_type<tc>, window_params = [{transform_indices = @transform_0, window_bounds = array<i64: 256, 128>}, {pipeline_mode = #tpu.pipeline_mode<synchronous>, transform_indices = @transform_1, window_bounds = array<i64: 128, 128>}, {pipeline_mode = #tpu.pipeline_mode<synchronous>, transform_indices = @transform_2, window_bounds = array<i64: 1, 128>}, {pipeline_mode = #tpu.pipeline_mode<synchronous>, transform_indices = @transform_3, window_bounds = array<i64: 128, 256>}, {pipeline_mode = #tpu.pipeline_mode<synchronous>, transform_indices = @transform_4, window_bounds = array<i64: 1, 256>}, {pipeline_mode = #tpu.pipeline_mode<synchronous>, transform_indices = @transform_5, window_bounds = array<i64: 256, 512>}, {pipeline_mode = #tpu.pipeline_mode<synchronous>, transform_indices = @transform_6, window_bounds = array<i64: 1, 512>}, {pipeline_mode = #tpu.pipeline_mode<synchronous>, transform_indices = @transform_7, window_bounds = array<i64: 512, 256>}, {pipeline_mode = #tpu.pipeline_mode<synchronous>, transform_indices = @transform_8, window_bounds = array<i64: 1, 256>}, {pipeline_mode = #tpu.pipeline_mode<synchronous>, transform_indices = @transform_9, window_bounds = array<i64: 256, 64>}, {pipeline_mode = #tpu.pipeline_mode<synchronous>, transform_indices = @transform_10, window_bounds = array<i64: 1, 64>}, {pipeline_mode = #tpu.pipeline_mode<synchronous>, transform_indices = @transform_11, window_bounds = array<i64: 1, 64>}, {pipeline_mode = #tpu.pipeline_mode<synchronous>, transform_indices = @transform_12, window_bounds = array<i64: 1, 1>}, {transform_indices = @transform_13, window_bounds = array<i64: 256, 1>}]} {
    %c0 = arith.constant 0 : index
    %c0_0 = arith.constant 0 : index
    %0 = vector.load %arg1[%c0, %c0_0] : memref<256x128xf32, #tpu.memory_space<vmem>>, vector<256x128xf32>
    %1 = arith.truncf %0 : vector<256x128xf32> to vector<256x128xbf16>
    %c0_1 = arith.constant 0 : index
    %c0_2 = arith.constant 0 : index
    %2 = vector.load %arg2[%c0_1, %c0_2] : memref<128x128xbf16, #tpu.memory_space<vmem>>, vector<128x128xbf16>
    %cst = arith.constant dense<0.000000e+00> : vector<256x128xf32>
    %3 = tpu.matmul %1, %2, %cst {dimension_numbers = #tpu.dot_dimension_numbers<[1], [0], [0], [1], [0, 0, 1, 1], [], []>} : vector<256x128xbf16>, vector<128x128xbf16>, vector<256x128xf32> -> vector<256x128xf32>
    %c0_3 = arith.constant 0 : index
    %c0_4 = arith.constant 0 : index
    %4 = vector.load %arg3[%c0_3, %c0_4] : memref<1x128xf32, #tpu.memory_space<vmem>>, vector<1x128xf32>
    %5 = vector.broadcast %4 : vector<1x128xf32> to vector<256x128xf32>
    %6 = arith.addf %3, %5 : vector<256x128xf32>
    %cst_5 = arith.constant 0.000000e+00 : f32
    %7 = vector.broadcast %cst_5 : f32 to vector<256x128xf32>
    %8 = arith.maximumf %6, %7 : vector<256x128xf32>
    %9 = arith.truncf %8 : vector<256x128xf32> to vector<256x128xbf16>
    %c0_6 = arith.constant 0 : index
    %c0_7 = arith.constant 0 : index
    %10 = vector.load %arg4[%c0_6, %c0_7] : memref<128x256xbf16, #tpu.memory_space<vmem>>, vector<128x256xbf16>
    %cst_8 = arith.constant dense<0.000000e+00> : vector<256x256xf32>
    %11 = tpu.matmul %9, %10, %cst_8 {dimension_numbers = #tpu.dot_dimension_numbers<[1], [0], [0], [1], [0, 0, 1, 1], [], []>} : vector<256x128xbf16>, vector<128x256xbf16>, vector<256x256xf32> -> vector<256x256xf32>
    %c0_9 = arith.constant 0 : index
    %c0_10 = arith.constant 0 : index
    %12 = vector.load %arg5[%c0_9, %c0_10] : memref<1x256xf32, #tpu.memory_space<vmem>>, vector<1x256xf32>
    %13 = vector.broadcast %12 : vector<1x256xf32> to vector<256x256xf32>
    %14 = arith.addf %11, %13 : vector<256x256xf32>
    %cst_11 = arith.constant 0.000000e+00 : f32
    %15 = vector.broadcast %cst_11 : f32 to vector<256x256xf32>
    %16 = arith.maximumf %14, %15 : vector<256x256xf32>
    %17 = arith.truncf %16 : vector<256x256xf32> to vector<256x256xbf16>
    %c0_12 = arith.constant 0 : index
    %c0_13 = arith.constant 0 : index
    %18 = vector.load %arg6[%c0_12, %c0_13] : memref<256x512xbf16, #tpu.memory_space<vmem>>, vector<256x512xbf16>
    %cst_14 = arith.constant dense<0.000000e+00> : vector<256x512xf32>
    %19 = tpu.matmul %17, %18, %cst_14 {dimension_numbers = #tpu.dot_dimension_numbers<[1], [0], [0], [1], [0, 0, 1, 1], [], []>} : vector<256x256xbf16>, vector<256x512xbf16>, vector<256x512xf32> -> vector<256x512xf32>
    %c0_15 = arith.constant 0 : index
    %c0_16 = arith.constant 0 : index
    %20 = vector.load %arg7[%c0_15, %c0_16] : memref<1x512xf32, #tpu.memory_space<vmem>>, vector<1x512xf32>
    %21 = vector.broadcast %20 : vector<1x512xf32> to vector<256x512xf32>
    %22 = arith.addf %19, %21 : vector<256x512xf32>
    %cst_17 = arith.constant 0.000000e+00 : f32
    %23 = vector.broadcast %cst_17 : f32 to vector<256x512xf32>
    %24 = arith.maximumf %22, %23 : vector<256x512xf32>
    %25 = arith.truncf %24 : vector<256x512xf32> to vector<256x512xbf16>
    %c0_18 = arith.constant 0 : index
    %c0_19 = arith.constant 0 : index
    %26 = vector.load %arg8[%c0_18, %c0_19] : memref<512x256xbf16, #tpu.memory_space<vmem>>, vector<512x256xbf16>
    %cst_20 = arith.constant dense<0.000000e+00> : vector<256x256xf32>
    %27 = tpu.matmul %25, %26, %cst_20 {dimension_numbers = #tpu.dot_dimension_numbers<[1], [0], [0], [1], [0, 0, 1, 1], [], []>} : vector<256x512xbf16>, vector<512x256xbf16>, vector<256x256xf32> -> vector<256x256xf32>
    %c0_21 = arith.constant 0 : index
    %c0_22 = arith.constant 0 : index
    %28 = vector.load %arg9[%c0_21, %c0_22] : memref<1x256xf32, #tpu.memory_space<vmem>>, vector<1x256xf32>
    %29 = vector.broadcast %28 : vector<1x256xf32> to vector<256x256xf32>
    %30 = arith.addf %27, %29 : vector<256x256xf32>
    %cst_23 = arith.constant 0.000000e+00 : f32
    %31 = vector.broadcast %cst_23 : f32 to vector<256x256xf32>
    %32 = arith.maximumf %30, %31 : vector<256x256xf32>
    %33 = arith.truncf %32 : vector<256x256xf32> to vector<256x256xbf16>
    %c0_24 = arith.constant 0 : index
    %c0_25 = arith.constant 0 : index
    %34 = vector.load %arg10[%c0_24, %c0_25] : memref<256x64xbf16, #tpu.memory_space<vmem>>, vector<256x64xbf16>
    %cst_26 = arith.constant dense<0.000000e+00> : vector<256x64xf32>
    %35 = tpu.matmul %33, %34, %cst_26 {dimension_numbers = #tpu.dot_dimension_numbers<[1], [0], [0], [1], [0, 0, 1, 1], [], []>} : vector<256x256xbf16>, vector<256x64xbf16>, vector<256x64xf32> -> vector<256x64xf32>
    %c0_27 = arith.constant 0 : index
    %c0_28 = arith.constant 0 : index
    %36 = vector.load %arg11[%c0_27, %c0_28] : memref<1x64xf32, #tpu.memory_space<vmem>>, vector<1x64xf32>
    %37 = vector.broadcast %36 : vector<1x64xf32> to vector<256x64xf32>
    %38 = arith.addf %35, %37 : vector<256x64xf32>
    %cst_29 = arith.constant 0.000000e+00 : f32
    %39 = vector.broadcast %cst_29 : f32 to vector<256x64xf32>
    %40 = arith.maximumf %38, %39 : vector<256x64xf32>
    %c0_30 = arith.constant 0 : index
    %c0_31 = arith.constant 0 : index
    %41 = vector.load %arg12[%c0_30, %c0_31] : memref<1x64xf32, #tpu.memory_space<vmem>>, vector<1x64xf32>
    %42 = vector.broadcast %41 : vector<1x64xf32> to vector<256x64xf32>
    %43 = arith.mulf %40, %42 : vector<256x64xf32>
    %cst_32 = arith.constant dense<0.000000e+00> : vector<256xf32>
    %44 = vector.multi_reduction <add>, %43, %cst_32 [1] : vector<256x64xf32> to vector<256xf32>
    %45 = vector.shape_cast %44 : vector<256xf32> to vector<256x1xf32>
    %c0_33 = arith.constant 0 : index
    %c0_34 = arith.constant 0 : index
    %46 = vector.load %arg13[%c0_33, %c0_34] : memref<1x1xf32, #tpu.memory_space<vmem>>, vector<1x1xf32>
    %47 = vector.broadcast %46 : vector<1x1xf32> to vector<256x1xf32>
    %48 = arith.addf %45, %47 : vector<256x1xf32>
    %c0_35 = arith.constant 0 : index
    %c0_36 = arith.constant 0 : index
    %49 = vector.load %arg14[%c0_35, %c0_36] : memref<256x1xf32, #tpu.memory_space<vmem>>, vector<256x1xf32>
    tpu.vector_store %arg14[%c0_35, %c0_36], %48 {strides = array<i32>} : memref<256x1xf32, #tpu.memory_space<vmem>>, vector<256x1xf32>,
    return
  }
  func.func @transform_0(%arg0: i32) -> (i32, i32) {
    %c0_i32 = arith.constant 0 : i32
    %c0_i32_0 = arith.constant 0 : i32
    return %arg0, %c0_i32 : i32, i32
  }
  func.func @transform_1(%arg0: i32) -> (i32, i32) {
    %c0_i32 = arith.constant 0 : i32
    %c0_i32_0 = arith.constant 0 : i32
    %c0_i32_1 = arith.constant 0 : i32
    return %c0_i32, %c0_i32_0 : i32, i32
  }
  func.func @transform_2(%arg0: i32) -> (i32, i32) {
    %c0_i32 = arith.constant 0 : i32
    %c0_i32_0 = arith.constant 0 : i32
    %c0_i32_1 = arith.constant 0 : i32
    return %c0_i32, %c0_i32_0 : i32, i32
  }
  func.func @transform_3(%arg0: i32) -> (i32, i32) {
    %c0_i32 = arith.constant 0 : i32
    %c0_i32_0 = arith.constant 0 : i32
    %c0_i32_1 = arith.constant 0 : i32
    return %c0_i32, %c0_i32_0 : i32, i32
  }
  func.func @transform_4(%arg0: i32) -> (i32, i32) {
    %c0_i32 = arith.constant 0 : i32
    %c0_i32_0 = arith.constant 0 : i32
    %c0_i32_1 = arith.constant 0 : i32
    return %c0_i32, %c0_i32_0 : i32, i32
  }
  func.func @transform_5(%arg0: i32) -> (i32, i32) {
    %c0_i32 = arith.constant 0 : i32
    %c0_i32_0 = arith.constant 0 : i32
    %c0_i32_1 = arith.constant 0 : i32
    return %c0_i32, %c0_i32_0 : i32, i32
  }
  func.func @transform_6(%arg0: i32) -> (i32, i32) {
    %c0_i32 = arith.constant 0 : i32
    %c0_i32_0 = arith.constant 0 : i32
    %c0_i32_1 = arith.constant 0 : i32
    return %c0_i32, %c0_i32_0 : i32, i32
  }
  func.func @transform_7(%arg0: i32) -> (i32, i32) {
    %c0_i32 = arith.constant 0 : i32
    %c0_i32_0 = arith.constant 0 : i32
    %c0_i32_1 = arith.constant 0 : i32
    return %c0_i32, %c0_i32_0 : i32, i32
  }
  func.func @transform_8(%arg0: i32) -> (i32, i32) {
    %c0_i32 = arith.constant 0 : i32
    %c0_i32_0 = arith.constant 0 : i32
    %c0_i32_1 = arith.constant 0 : i32
    return %c0_i32, %c0_i32_0 : i32, i32
  }
  func.func @transform_9(%arg0: i32) -> (i32, i32) {
    %c0_i32 = arith.constant 0 : i32
    %c0_i32_0 = arith.constant 0 : i32
    %c0_i32_1 = arith.constant 0 : i32
    return %c0_i32, %c0_i32_0 : i32, i32
  }
  func.func @transform_10(%arg0: i32) -> (i32, i32) {
    %c0_i32 = arith.constant 0 : i32
    %c0_i32_0 = arith.constant 0 : i32
    %c0_i32_1 = arith.constant 0 : i32
    return %c0_i32, %c0_i32_0 : i32, i32
  }
  func.func @transform_11(%arg0: i32) -> (i32, i32) {
    %c0_i32 = arith.constant 0 : i32
    %c0_i32_0 = arith.constant 0 : i32
    %c0_i32_1 = arith.constant 0 : i32
    return %c0_i32, %c0_i32_0 : i32, i32
  }
  func.func @transform_12(%arg0: i32) -> (i32, i32) {
    %c0_i32 = arith.constant 0 : i32
    %c0_i32_0 = arith.constant 0 : i32
    %c0_i32_1 = arith.constant 0 : i32
    return %c0_i32, %c0_i32_0 : i32, i32
  }
  func.func @transform_13(%arg0: i32) -> (i32, i32) {
    %c0_i32 = arith.constant 0 : i32
    %c0_i32_0 = arith.constant 0 : i32
    return %arg0, %c0_i32 : i32, i32
  }
}

</mosaic_0001>

<llo_original>
// kernel: ql_forward.1
$region0: #{ql_forward.1}
  #allocation0 [shape = 'u32[]', space=smem, size = 0x4, offset = 0x4, fixed_abs, tag = 'smem constant byte address 0x4 - core index']
  #allocation1 [shape = 'u32[144,128]{1,0:T(1,128)}', space=vmem, size = 0x12000, scoped, tag = 'internal scratch']
  #allocation2 [shape = 'f32[1,1]{1,0:T(1,128)S(1)}', space=vmem, size = 0x200, scoped, tag = 'scoped memory for ql_forward.1']
  %s0 = inlined_call_operand.vmem [shape: f32[256,128], index: 0, kind: input, shape index: {}]
  %s1 = inlined_call_operand.vmem [shape: bf16[128,128], index: 1, kind: input, shape index: {}]
  %s2 = inlined_call_operand.vmem [shape: f32[1,128], index: 2, kind: input, shape index: {}]
  %s3 = inlined_call_operand.vmem [shape: bf16[128,256], index: 3, kind: input, shape index: {}]
  %s4 = inlined_call_operand.vmem [shape: f32[1,256], index: 4, kind: input, shape index: {}]
  %s5 = inlined_call_operand.vmem [shape: bf16[256,512], index: 5, kind: input, shape index: {}]
  %s6 = inlined_call_operand.vmem [shape: f32[1,512], index: 6, kind: input, shape index: {}]
  %s7 = inlined_call_operand.vmem [shape: bf16[512,256], index: 7, kind: input, shape index: {}]
  %s8 = inlined_call_operand.vmem [shape: f32[1,256], index: 8, kind: input, shape index: {}]
  %s9 = inlined_call_operand.vmem [shape: bf16[256,64], index: 9, kind: input, shape index: {}]
  %s10 = inlined_call_operand.vmem [shape: f32[1,64], index: 10, kind: input, shape index: {}]
  %s11 = inlined_call_operand.vmem [shape: f32[1,64], index: 11, kind: input, shape index: {}]
  %s12 = inlined_call_operand.<no memory space> [shape: f32[1,1], index: 12, kind: input, shape index: {}]
  %s13 = inlined_call_operand.vmem [shape: f32[256,1], index: 13, kind: output, shape index: {}]
  %s14 = sld [smem:[#allocation0]]
  $region62: #{ql_forward.1} parent=0
    _
  %s16 = ssub.s32 1, %s14
  %s17 = scalar_select 0, %s16, %s14
  %v18 = vstv %s12
  %19 = vst [vmem:[#allocation2] sm:$0x1] %v18
  // Predicated region
  $region2: #{ql_forward.1} parent=0 // pred_check
    _
  $region3: #{ql_forward.1} parent=0 // pred_check_branch
    %21 = sbr.rel (0) target = $region5
  $region4: #{ql_forward.1} parent=0 // pred_region
    _
  $region5: #{ql_forward.1} parent=0 // pred_fallthru
    _
  // Predicated region
  $region6: #{ql_forward.1} parent=0 // pred_check
    _
  $region7: #{ql_forward.1} parent=0 // pred_check_branch
    %23 = sbr.rel (0) target = $region9
  $region8: #{ql_forward.1} parent=0 // pred_region
    _
  $region9: #{ql_forward.1} parent=0 // pred_fallthru
    _
  // Predicated region
  $region10: #{ql_forward.1} parent=0 // pred_check
    _
  $region11: #{ql_forward.1} parent=0 // pred_check_branch
    %25 = sbr.rel (0) target = $region13
  $region12: #{ql_forward.1} parent=0 // pred_region
    _
  $region13: #{ql_forward.1} parent=0 // pred_fallthru
    _
  // Predicated region
  $region14: #{ql_forward.1} parent=0 // pred_check
    _
  $region15: #{ql_forward.1} parent=0 // pred_check_branch
    %27 = sbr.rel (0) target = $region17
  $region16: #{ql_forward.1} parent=0 // pred_region
    _
  $region17: #{ql_forward.1} parent=0 // pred_fallthru
    _
  // Predicated region
  $region18: #{ql_forward.1} parent=0 // pred_check
    _
  $region19: #{ql_forward.1} parent=0 // pred_check_branch
    %29 = sbr.rel (0) target = $region21
  $region20: #{ql_forward.1} parent=0 // pred_region
    _
  $region21: #{ql_forward.1} parent=0 // pred_fallthru
    _
  // Predicated region
  $region22: #{ql_forward.1} parent=0 // pred_check
    _
  $region23: #{ql_forward.1} parent=0 // pred_check_branch
    %31 = sbr.rel (0) target = $region25
  $region24: #{ql_forward.1} parent=0 // pred_region
    _
  $region25: #{ql_forward.1} parent=0 // pred_fallthru
    _
  // Predicated region
  $region26: #{ql_forward.1} parent=0 // pred_check
    _
  $region27: #{ql_forward.1} parent=0 // pred_check_branch
    %33 = sbr.rel (0) target = $region29
  $region28: #{ql_forward.1} parent=0 // pred_region
    _
  $region29: #{ql_forward.1} parent=0 // pred_fallthru
    _
  // Predicated region
  $region30: #{ql_forward.1} parent=0 // pred_check
    _
  $region31: #{ql_forward.1} parent=0 // pred_check_branch
    %35 = sbr.rel (0) target = $region33
  $region32: #{ql_forward.1} parent=0 // pred_region
    _
  $region33: #{ql_forward.1} parent=0 // pred_fallthru
    _
  // Predicated region
  $region34: #{ql_forward.1} parent=0 // pred_check
    _
  $region35: #{ql_forward.1} parent=0 // pred_check_branch
    %37 = sbr.rel (0) target = $region37
  $region36: #{ql_forward.1} parent=0 // pred_region
    _
  $region37: #{ql_forward.1} parent=0 // pred_fallthru
    _
  // Predicated region
  $region38: #{ql_forward.1} parent=0 // pred_check
    _
  $region39: #{ql_forward.1} parent=0 // pred_check_branch
    %39 = sbr.rel (0) target = $region41
  $region40: #{ql_forward.1} parent=0 // pred_region
    _
  $region41: #{ql_forward.1} parent=0 // pred_fallthru
    _
  // Predicated region
  $region42: #{ql_forward.1} parent=0 // pred_check
    _
  $region43: #{ql_forward.1} parent=0 // pred_check_branch
    %41 = sbr.rel (0) target = $region45
  $region44: #{ql_forward.1} parent=0 // pred_region
    _
  $region45: #{ql_forward.1} parent=0 // pred_fallthru
    _
  // Predicated region
  $region46: #{ql_forward.1} parent=0 // pred_check
    _
  $region47: #{ql_forward.1} parent=0 // pred_check_branch
    %43 = sbr.rel (0) target = $region49
  $region48: #{ql_forward.1} parent=0 // pred_region
    _
  $region49: #{ql_forward.1} parent=0 // pred_fallthru
    _
  // Predicated region
  $region50: #{ql_forward.1} parent=0 // pred_check
    _
  $region51: #{ql_forward.1} parent=0 // pred_check_branch
    %45 = sbr.rel (0) target = $region53
  $region52: #{ql_forward.1} parent=0 // pred_region
    _
  $region53: #{ql_forward.1} parent=0 // pred_fallthru
    _
  %v47 = vld [vmem:[%s0] sm:$0xff]
  %v48 = vld [vmem:[%s0 + $0x8] sm:$0xff]
  %v49 = vld [vmem:[%s0 + $0x10] sm:$0xff]
  %v50 = vld [vmem:[%s0 + $0x18] sm:$0xff]
  %v51 = vld [vmem:[%s0 + $0x20] sm:$0xff]
  %v52 = vld [vmem:[%s0 + $0x28] sm:$0xff]
  %v53 = vld [vmem:[%s0 + $0x30] sm:$0xff]
  %v54 = vld [vmem:[%s0 + $0x38] sm:$0xff]
  %v55 = vld [vmem:[%s0 + $0x40] sm:$0xff]
  %v56 = vld [vmem:[%s0 + $0x48] sm:$0xff]
  %v57 = vld [vmem:[%s0 + $0x50] sm:$0xff]
  %v58 = vld [vmem:[%s0 + $0x58] sm:$0xff]
  %v59 = vld [vmem:[%s0 + $0x60] sm:$0xff]
  %v60 = vld [vmem:[%s0 + $0x68] sm:$0xff]
  %v61 = vld [vmem:[%s0 + $0x70] sm:$0xff]
  %v62 = vld [vmem:[%s0 + $0x78] sm:$0xff]
  %v63 = vld [vmem:[%s0 + $0x80] sm:$0xff]
  %v64 = vld [vmem:[%s0 + $0x88] sm:$0xff]
  %v65 = vld [vmem:[%s0 + $0x90] sm:$0xff]
  %v66 = vld [vmem:[%s0 + $0x98] sm:$0xff]
  %v67 = vld [vmem:[%s0 + $0xa0] sm:$0xff]
  %v68 = vld [vmem:[%s0 + $0xa8] sm:$0xff]
  %v69 = vld [vmem:[%s0 + $0xb0] sm:$0xff]
  %v70 = vld [vmem:[%s0 + $0xb8] sm:$0xff]
  %v71 = vld [vmem:[%s0 + $0xc0] sm:$0xff]
  %v72 = vld [vmem:[%s0 + $0xc8] sm:$0xff]
  %v73 = vld [vmem:[%s0 + $0xd0] sm:$0xff]
  %v74 = vld [vmem:[%s0 + $0xd8] sm:$0xff]
  %v75 = vld [vmem:[%s0 + $0xe0] sm:$0xff]
  %v76 = vld [vmem:[%s0 + $0xe8] sm:$0xff]
  %v77 = vld [vmem:[%s0 + $0xf0] sm:$0xff]
  %v78 = vld [vmem:[%s0 + $0xf8] sm:$0xff]
  %v79 = vpack.c.bf16 %v48, %v47
  %v80 = vpack.c.bf16 %v50, %v49
  %v81 = vpack.c.bf16 %v52, %v51
  %v82 = vpack.c.bf16 %v54, %v53
  %v83 = vpack.c.bf16 %v56, %v55
  %v84 = vpack.c.bf16 %v58, %v57
  %v85 = vpack.c.bf16 %v60, %v59
  %v86 = vpack.c.bf16 %v62, %v61
  %v87 = vpack.c.bf16 %v64, %v63
  %v88 = vpack.c.bf16 %v66, %v65
  %v89 = vpack.c.bf16 %v68, %v67
  %v90 = vpack.c.bf16 %v70, %v69
  %v91 = vpack.c.bf16 %v72, %v71
  %v92 = vpack.c.bf16 %v74, %v73
  %v93 = vpack.c.bf16 %v76, %v75
  %v94 = vpack.c.bf16 %v78, %v77
  %v95 = vld [vmem:[%s1] sm:$0xf]
  %v96 = vld [vmem:[%s1 + $0x4] sm:$0xf]
  %v97 = vld [vmem:[%s1 + $0x8] sm:$0xf]
  %v98 = vld [vmem:[%s1 + $0xc] sm:$0xf]
  %v99 = vld [vmem:[%s1 + $0x10] sm:$0xf]
  %v100 = vld [vmem:[%s1 + $0x14] sm:$0xf]
  %v101 = vld [vmem:[%s1 + $0x18] sm:$0xf]
  %v102 = vld [vmem:[%s1 + $0x1c] sm:$0xf]
  %v103 = vld [vmem:[%s1 + $0x20] sm:$0xf]
  %v104 = vld [vmem:[%s1 + $0x24] sm:$0xf]
  %v105 = vld [vmem:[%s1 + $0x28] sm:$0xf]
  %v106 = vld [vmem:[%s1 + $0x2c] sm:$0xf]
  %v107 = vld [vmem:[%s1 + $0x30] sm:$0xf]
  %v108 = vld [vmem:[%s1 + $0x34] sm:$0xf]
  %v109 = vld [vmem:[%s1 + $0x38] sm:$0xf]
  %v110 = vld [vmem:[%s1 + $0x3c] sm:$0xf]
  %v111 = vld [vmem:[%s2] sm:$0x1]
  %v113 = vlaneseq
  %v114 = vshrl.u32 %v113, 7
  %v115 = vsub.s32 0, %v114
  %v116 = vrot.slane %v111, %v115
  %v134 = vunpack.c.l.b16 %v95
  %v135 = vunpack.c.l.b16 %v96
  %v136 = vunpack.c.l.b16 %v97
  %v137 = vunpack.c.l.b16 %v98
  %v138 = vunpack.c.l.b16 %v99
  %v139 = vunpack.c.l.b16 %v100
  %v140 = vunpack.c.l.b16 %v101
  %v141 = vunpack.c.l.b16 %v102
  %v142 = vunpack.c.l.b16 %v103
  %v143 = vunpack.c.l.b16 %v104
  %v144 = vunpack.c.l.b16 %v105
  %v145 = vunpack.c.l.b16 %v106
  %v146 = vunpack.c.l.b16 %v107
  %v147 = vunpack.c.l.b16 %v108
  %v148 = vunpack.c.l.b16 %v109
  %v149 = vunpack.c.l.b16 %v110
  %v150 = vpack.c.b16 %v135, %v134
  %v151 = vpack.c.b16 %v137, %v136
  %v152 = vpack.c.b16 %v139, %v138
  %v153 = vpack.c.b16 %v141, %v140
  %v154 = vpack.c.b16 %v143, %v142
  %v155 = vpack.c.b16 %v145, %v144
  %v156 = vpack.c.b16 %v147, %v146
  %v157 = vpack.c.b16 %v149, %v148
  %166 = vmatprep.subr.bf16.mxu0 0
  %167 = vmatpush1.bf16.msra.mxu0 %v150
  %168 = vmatprep.subr.bf16.mxu0 0
  %169 = vmatpush1.bf16.msra.mxu0 %v151
  %170 = vmatprep.subr.bf16.mxu0 0
  %171 = vmatpush1.bf16.msra.mxu0 %v152
  %172 = vmatprep.subr.bf16.mxu0 0
  %173 = vmatpush1.bf16.msra.mxu0 %v153
  %174 = vmatprep.subr.bf16.mxu0 0
  %175 = vmatpush1.bf16.msra.mxu0 %v154
  %176 = vmatprep.subr.bf16.mxu0 0
  %177 = vmatpush1.bf16.msra.mxu0 %v155
  %178 = vmatprep.subr.bf16.mxu0 0
  %179 = vmatpush1.bf16.msra.mxu0 %v156
  %180 = vmatprep.subr.bf16.mxu0 0
  %181 = vmatpush1.bf16.msra.mxu0 %v157
  %182 = vmatprep.subr.bf16.mxu0 0
  %183 = vmatpush1.bf16.msra.mxu0 0
  %184 = vmatprep.subr.bf16.mxu0 0
  %185 = vmatpush1.bf16.msra.mxu0 0
  %186 = vmatprep.subr.bf16.mxu0 0
  %187 = vmatpush1.bf16.msra.mxu0 0
  %188 = vmatprep.subr.bf16.mxu0 0
  %189 = vmatpush1.bf16.msra.mxu0 0
  %190 = vmatprep.subr.bf16.mxu0 0
  %191 = vmatpush1.bf16.msra.mxu0 0
  %192 = vmatprep.subr.bf16.mxu0 0
  %193 = vmatpush1.bf16.msra.mxu0 0
  %194 = vmatprep.subr.bf16.mxu0 0
  %195 = vmatpush1.bf16.msra.mxu0 0
  %196 = vmatprep.subr.bf16.mxu0 0
  %197 = vmatpush1.bf16.msra.mxu0 0
  %198 = vmatprep.mubr.bf16.mxu0 0
  %199 = vmatmul.mubr.bf16.gmra.mrb[0].mxu0 %v79
  %v200 = vpop.f32.mrb[0].mxu0
  %v201 = vadd.f32 %v116, %v200
  %v202 = vpop.f32.mrb[0].mxu0
  %v203 = vpop.f32.mrb[0].mxu0
  %v204 = vadd.f32 %v116, %v203
  %v205 = vpop.f32.mrb[0].mxu0
  %206 = vmatprep.mubr.bf16.mxu0 0
  %207 = vmatmul.mubr.bf16.gmra.mrb[0].mxu0 %v80
  %v208 = vpop.f32.mrb[0].mxu0
  %v209 = vadd.f32 %v116, %v208
  %v210 = vpop.f32.mrb[0].mxu0
  %v211 = vpop.f32.mrb[0].mxu0
  %v212 = vadd.f32 %v116, %v211
  %v213 = vpop.f32.mrb[0].mxu0
  %214 = vmatprep.mubr.bf16.mxu0 0
  %215 = vmatmul.mubr.bf16.gmra.mrb[0].mxu0 %v81
  %v216 = vpop.f32.mrb[0].mxu0
  %v217 = vadd.f32 %v116, %v216
  %v218 = vpop.f32.mrb[0].mxu0
  %v219 = vpop.f32.mrb[0].mxu0
  %v220 = vadd.f32 %v116, %v219
  %v221 = vpop.f32.mrb[0].mxu0
  %222 = vmatprep.mubr.bf16.mxu0 0
  %223 = vmatmul.mubr.bf16.gmra.mrb[0].mxu0 %v82
  %v224 = vpop.f32.mrb[0].mxu0
  %v225 = vadd.f32 %v116, %v224
  %v226 = vpop.f32.mrb[0].mxu0
  %v227 = vpop.f32.mrb[0].mxu0
  %v228 = vadd.f32 %v116, %v227
  %v229 = vpop.f32.mrb[0].mxu0
  %230 = vmatprep.mubr.bf16.mxu0 0
  %231 = vmatmul.mubr.bf16.gmra.mrb[0].mxu0 %v83
  %v232 = vpop.f32.mrb[0].mxu0
  %v233 = vadd.f32 %v116, %v232
  %v234 = vpop.f32.mrb[0].mxu0
  %v235 = vpop.f32.mrb[0].mxu0
  %v236 = vadd.f32 %v116, %v235
  %v237 = vpop.f32.mrb[0].mxu0
  %238 = vmatprep.mubr.bf16.mxu0 0
  %239 = vmatmul.mubr.bf16.gmra.mrb[0].mxu0 %v84
  %v240 = vpop.f32.mrb[0].mxu0
  %v241 = vadd.f32 %v116, %v240
  %v242 = vpop.f32.mrb[0].mxu0
  %v243 = vpop.f32.mrb[0].mxu0
  %v244 = vadd.f32 %v116, %v243
  %v245 = vpop.f32.mrb[0].mxu0
  %246 = vmatprep.mubr.bf16.mxu0 0
  %247 = vmatmul.mubr.bf16.gmra.mrb[0].mxu0 %v85
  %v248 = vpop.f32.mrb[0].mxu0
  %v249 = vadd.f32 %v116, %v248
  %v250 = vpop.f32.mrb[0].mxu0
  %v251 = vpop.f32.mrb[0].mxu0
  %v252 = vadd.f32 %v116, %v251
  %v253 = vpop.f32.mrb[0].mxu0
  %254 = vmatprep.mubr.bf16.mxu0 0
  %255 = vmatmul.mubr.bf16.gmra.mrb[0].mxu0 %v86
  %v256 = vpop.f32.mrb[0].mxu0
  %v257 = vadd.f32 %v116, %v256
  %v258 = vpop.f32.mrb[0].mxu0
  %v259 = vpop.f32.mrb[0].mxu0
  %v260 = vadd.f32 %v116, %v259
  %v261 = vpop.f32.mrb[0].mxu0
  %262 = vmatprep.mubr.bf16.mxu0 0
  %263 = vmatmul.mubr.bf16.gmra.mrb[0].mxu0 %v87
  %v264 = vpop.f32.mrb[0].mxu0
  %v265 = vadd.f32 %v116, %v264
  %v266 = vpop.f32.mrb[0].mxu0
  %v267 = vpop.f32.mrb[0].mxu0
  %v268 = vadd.f32 %v116, %v267
  %v269 = vpop.f32.mrb[0].mxu0
  %270 = vmatprep.mubr.bf16.mxu0 0
  %271 = vmatmul.mubr.bf16.gmra.mrb[0].mxu0 %v88
  %v272 = vpop.f32.mrb[0].mxu0
  %v273 = vadd.f32 %v116, %v272
  %v274 = vpop.f32.mrb[0].mxu0
  %v275 = vpop.f32.mrb[0].mxu0
  %v276 = vadd.f32 %v116, %v275
  %v277 = vpop.f32.mrb[0].mxu0
  %278 = vmatprep.mubr.bf16.mxu0 0
  %279 = vmatmul.mubr.bf16.gmra.mrb[0].mxu0 %v89
  %v280 = vpop.f32.mrb[0].mxu0
  %v281 = vadd.f32 %v116, %v280
  %v282 = vpop.f32.mrb[0].mxu0
  %v283 = vpop.f32.mrb[0].mxu0
  %v284 = vadd.f32 %v116, %v283
  %v285 = vpop.f32.mrb[0].mxu0
  %286 = vmatprep.mubr.bf16.mxu0 0
  %287 = vmatmul.mubr.bf16.gmra.mrb[0].mxu0 %v90
  %v288 = vpop.f32.mrb[0].mxu0
  %v289 = vadd.f32 %v116, %v288
  %v290 = vpop.f32.mrb[0].mxu0
  %v291 = vpop.f32.mrb[0].mxu0
  %v292 = vadd.f32 %v116, %v291
  %v293 = vpop.f32.mrb[0].mxu0
  %294 = vmatprep.mubr.bf16.mxu0 0
  %295 = vmatmul.mubr.bf16.gmra.mrb[0].mxu0 %v91
  %v296 = vpop.f32.mrb[0].mxu0
  %v297 = vadd.f32 %v116, %v296
  %v298 = vpop.f32.mrb[0].mxu0
  %v299 = vpop.f32.mrb[0].mxu0
  %v300 = vadd.f32 %v116, %v299
  %v301 = vpop.f32.mrb[0].mxu0
  %302 = vmatprep.mubr.bf16.mxu0 0
  %303 = vmatmul.mubr.bf16.gmra.mrb[0].mxu0 %v92
  %v304 = vpop.f32.mrb[0].mxu0
  %v305 = vadd.f32 %v116, %v304
  %v306 = vpop.f32.mrb[0].mxu0
  %v307 = vpop.f32.mrb[0].mxu0
  %v308 = vadd.f32 %v116, %v307
  %v309 = vpop.f32.mrb[0].mxu0
  %310 = vmatprep.mubr.bf16.mxu0 0
  %311 = vmatmul.mubr.bf16.gmra.mrb[0].mxu0 %v93
  %v312 = vpop.f32.mrb[0].mxu0
  %v313 = vadd.f32 %v116, %v312
  %v314 = vpop.f32.mrb[0].mxu0
  %v315 = vpop.f32.mrb[0].mxu0
  %v316 = vadd.f32 %v116, %v315
  %v317 = vpop.f32.mrb[0].mxu0
  %318 = vmatprep.mubr.bf16.mxu0 0
  %319 = vmatmul.mubr.bf16.gmra.mrb[0].mxu0 %v94
  %v320 = vpop.f32.mrb[0].mxu0
  %v321 = vadd.f32 %v116, %v320
  %v322 = vpop.f32.mrb[0].mxu0
  %v323 = vpop.f32.mrb[0].mxu0
  %v324 = vadd.f32 %v116, %v323
  %v325 = vpop.f32.mrb[0].mxu0
  %326 = vdwg.mxu0
  %v327 = vmax.f32 %v201, 0.0
  %v328 = vmax.f32 %v204, 0.0
  %v329 = vmax.f32 %v209, 0.0
  %v330 = vmax.f32 %v212, 0.0
  %v331 = vmax.f32 %v217, 0.0
  %v332 = vmax.f32 %v220, 0.0
  %v333 = vmax.f32 %v225, 0.0
  %v334 = vmax.f32 %v228, 0.0
  %v335 = vmax.f32 %v233, 0.0
  %v336 = vmax.f32 %v236, 0.0
  %v337 = vmax.f32 %v241, 0.0
  %v338 = vmax.f32 %v244, 0.0
  %v339 = vmax.f32 %v249, 0.0
  %v340 = vmax.f32 %v252, 0.0
  %v341 = vmax.f32 %v257, 0.0
  %v342 = vmax.f32 %v260, 0.0
  %v343 = vmax.f32 %v265, 0.0
  %v344 = vmax.f32 %v268, 0.0
  %v345 = vmax.f32 %v273, 0.0
  %v346 = vmax.f32 %v276, 0.0
  %v347 = vmax.f32 %v281, 0.0
  %v348 = vmax.f32 %v284, 0.0
  %v349 = vmax.f32 %v289, 0.0
  %v350 = vmax.f32 %v292, 0.0
  %v351 = vmax.f32 %v297, 0.0
  %v352 = vmax.f32 %v300, 0.0
  %v353 = vmax.f32 %v305, 0.0
  %v354 = vmax.f32 %v308, 0.0
  %v355 = vmax.f32 %v313, 0.0
  %v356 = vmax.f32 %v316, 0.0
  %v357 = vmax.f32 %v321, 0.0
  %v358 = vmax.f32 %v324, 0.0
  %v359 = vpack.c.bf16 %v328, %v327
  %v360 = vpack.c.bf16 %v330, %v329
  %v361 = vpack.c.bf16 %v332, %v331
  %v362 = vpack.c.bf16 %v334, %v333
  %v363 = vpack.c.bf16 %v336, %v335
  %v364 = vpack.c.bf16 %v338, %v337
  %v365 = vpack.c.bf16 %v340, %v339
  %v366 = vpack.c.bf16 %v342, %v341
  %v367 = vpack.c.bf16 %v344, %v343
  %v368 = vpack.c.bf16 %v346, %v345
  %v369 = vpack.c.bf16 %v348, %v347
  %v370 = vpack.c.bf16 %v350, %v349
  %v371 = vpack.c.bf16 %v352, %v351
  %v372 = vpack.c.bf16 %v354, %v353
  %v373 = vpack.c.bf16 %v356, %v355
  %v374 = vpack.c.bf16 %v358, %v357
  %v375 = vld [vmem:[%s3] sm:$0xff]
  %v376 = vld [vmem:[%s3 + $0x8] sm:$0xff]
  %v377 = vld [vmem:[%s3 + $0x10] sm:$0xff]
  %v378 = vld [vmem:[%s3 + $0x18] sm:$0xff]
  %v379 = vld [vmem:[%s3 + $0x20] sm:$0xff]
  %v380 = vld [vmem:[%s3 + $0x28] sm:$0xff]
  %v381 = vld [vmem:[%s3 + $0x30] sm:$0xff]
  %v382 = vld [vmem:[%s3 + $0x38] sm:$0xff]
  %v383 = vld [vmem:[%s3 + $0x40] sm:$0xff]
  %v384 = vld [vmem:[%s3 + $0x48] sm:$0xff]
  %v385 = vld [vmem:[%s3 + $0x50] sm:$0xff]
  %v386 = vld [vmem:[%s3 + $0x58] sm:$0xff]
  %v387 = vld [vmem:[%s3 + $0x60] sm:$0xff]
  %v388 = vld [vmem:[%s3 + $0x68] sm:$0xff]
  %v389 = vld [vmem:[%s3 + $0x70] sm:$0xff]
  %v390 = vld [vmem:[%s3 + $0x78] sm:$0xff]
  %v391 = vld [vmem:[%s4] sm:$0x3]
  %v393 = vlaneseq
  %v394 = vshrl.u32 %v393, 7
  %v395 = vsub.s32 0, %v394
  %v396 = vrot.slane %v391, %v395
  %v397 = vlaneseq
  %v398 = vshrl.u32 %v397, 7
  %v399 = vsub.s32 1, %v398
  %v400 = vrot.slane %v391, %v399
  %v419 = vunpack.c.l.b16 %v375
  %v420 = vunpack.c.h.b16 %v375
  %v421 = vunpack.c.l.b16 %v376
  %v422 = vunpack.c.h.b16 %v376
  %v423 = vunpack.c.l.b16 %v377
  %v424 = vunpack.c.h.b16 %v377
  %v425 = vunpack.c.l.b16 %v378
  %v426 = vunpack.c.h.b16 %v378
  %v427 = vunpack.c.l.b16 %v379
  %v428 = vunpack.c.h.b16 %v379
  %v429 = vunpack.c.l.b16 %v380
  %v430 = vunpack.c.h.b16 %v380
  %v431 = vunpack.c.l.b16 %v381
  %v432 = vunpack.c.h.b16 %v381
  %v433 = vunpack.c.l.b16 %v382
  %v434 = vunpack.c.h.b16 %v382
  %v435 = vunpack.c.l.b16 %v383
  %v436 = vunpack.c.h.b16 %v383
  %v437 = vunpack.c.l.b16 %v384
  %v438 = vunpack.c.h.b16 %v384
  %v439 = vunpack.c.l.b16 %v385
  %v440 = vunpack.c.h.b16 %v385
  %v441 = vunpack.c.l.b16 %v386
  %v442 = vunpack.c.h.b16 %v386
  %v443 = vunpack.c.l.b16 %v387
  %v444 = vunpack.c.h.b16 %v387
  %v445 = vunpack.c.l.b16 %v388
  %v446 = vunpack.c.h.b16 %v388
  %v447 = vunpack.c.l.b16 %v389
  %v448 = vunpack.c.h.b16 %v389
  %v449 = vunpack.c.l.b16 %v390
  %v450 = vunpack.c.h.b16 %v390
  %v451 = vpack.c.b16 %v421, %v419
  %v452 = vpack.c.b16 %v422, %v420
  %v453 = vpack.c.b16 %v425, %v423
  %v454 = vpack.c.b16 %v426, %v424
  %v455 = vpack.c.b16 %v429, %v427
  %v456 = vpack.c.b16 %v430, %v428
  %v457 = vpack.c.b16 %v433, %v431
  %v458 = vpack.c.b16 %v434, %v432
  %v459 = vpack.c.b16 %v437, %v435
  %v460 = vpack.c.b16 %v438, %v436
  %v461 = vpack.c.b16 %v441, %v439
  %v462 = vpack.c.b16 %v442, %v440
  %v463 = vpack.c.b16 %v445, %v443
  %v464 = vpack.c.b16 %v446, %v444
  %v465 = vpack.c.b16 %v449, %v447
  %v466 = vpack.c.b16 %v450, %v448
  %483 = vmatprep.subr.bf16.mxu0 %v452
  %484 = vmatpush1.bf16.msra.mxu0 %v451
  %485 = vmatprep.subr.bf16.mxu0 %v454
  %486 = vmatpush1.bf16.msra.mxu0 %v453
  %487 = vmatprep.subr.bf16.mxu0 %v456
  %488 = vmatpush1.bf16.msra.mxu0 %v455
  %489 = vmatprep.subr.bf16.mxu0 %v458
  %490 = vmatpush1.bf16.msra.mxu0 %v457
  %491 = vmatprep.subr.bf16.mxu0 %v460
  %492 = vmatpush1.bf16.msra.mxu0 %v459
  %493 = vmatprep.subr.bf16.mxu0 %v462
  %494 = vmatpush1.bf16.msra.mxu0 %v461
  %495 = vmatprep.subr.bf16.mxu0 %v464
  %496 = vmatpush1.bf16.msra.mxu0 %v463
  %497 = vmatprep.subr.bf16.mxu0 %v466
  %498 = vmatpush1.bf16.msra.mxu0 %v465
  %499 = vmatprep.subr.bf16.mxu0 0
  %500 = vmatpush1.bf16.msra.mxu0 0
  %501 = vmatprep.subr.bf16.mxu0 0
  %502 = vmatpush1.bf16.msra.mxu0 0
  %503 = vmatprep.subr.bf16.mxu0 0
  %504 = vmatpush1.bf16.msra.mxu0 0
  %505 = vmatprep.subr.bf16.mxu0 0
  %506 = vmatpush1.bf16.msra.mxu0 0
  %507 = vmatprep.subr.bf16.mxu0 0
  %508 = vmatpush1.bf16.msra.mxu0 0
  %509 = vmatprep.subr.bf16.mxu0 0
  %510 = vmatpush1.bf16.msra.mxu0 0
  %511 = vmatprep.subr.bf16.mxu0 0
  %512 = vmatpush1.bf16.msra.mxu0 0
  %513 = vmatprep.subr.bf16.mxu0 0
  %514 = vmatpush1.bf16.msra.mxu0 0
  %515 = vmatprep.mubr.bf16.mxu0 0
  %516 = vmatmul.mubr.bf16.gmra.mrb[0].mxu0 %v359
  %v517 = vpop.f32.mrb[0].mxu0
  %v518 = vadd.f32 %v396, %v517
  %v519 = vpop.f32.mrb[0].mxu0
  %v520 = vadd.f32 %v400, %v519
  %v521 = vpop.f32.mrb[0].mxu0
  %v522 = vadd.f32 %v396, %v521
  %v523 = vpop.f32.mrb[0].mxu0
  %v524 = vadd.f32 %v400, %v523
  %525 = vmatprep.mubr.bf16.mxu0 0
  %526 = vmatmul.mubr.bf16.gmra.mrb[0].mxu0 %v360
  %v527 = vpop.f32.mrb[0].mxu0
  %v528 = vadd.f32 %v396, %v527
  %v529 = vpop.f32.mrb[0].mxu0
  %v530 = vadd.f32 %v400, %v529
  %v531 = vpop.f32.mrb[0].mxu0
  %v532 = vadd.f32 %v396, %v531
  %v533 = vpop.f32.mrb[0].mxu0
  %v534 = vadd.f32 %v400, %v533
  %535 = vmatprep.mubr.bf16.mxu0 0
  %536 = vmatmul.mubr.bf16.gmra.mrb[0].mxu0 %v361
  %v537 = vpop.f32.mrb[0].mxu0
  %v538 = vadd.f32 %v396, %v537
  %v539 = vpop.f32.mrb[0].mxu0
  %v540 = vadd.f32 %v400, %v539
  %v541 = vpop.f32.mrb[0].mxu0
  %v542 = vadd.f32 %v396, %v541
  %v543 = vpop.f32.mrb[0].mxu0
  %v544 = vadd.f32 %v400, %v543
  %545 = vmatprep.mubr.bf16.mxu0 0
  %546 = vmatmul.mubr.bf16.gmra.mrb[0].mxu0 %v362
  %v547 = vpop.f32.mrb[0].mxu0
  %v548 = vadd.f32 %v396, %v547
  %v549 = vpop.f32.mrb[0].mxu0
  %v550 = vadd.f32 %v400, %v549
  %v551 = vpop.f32.mrb[0].mxu0
  %v552 = vadd.f32 %v396, %v551
  %v553 = vpop.f32.mrb[0].mxu0
  %v554 = vadd.f32 %v400, %v553
  %555 = vmatprep.mubr.bf16.mxu0 0
  %556 = vmatmul.mubr.bf16.gmra.mrb[0].mxu0 %v363
  %v557 = vpop.f32.mrb[0].mxu0
  %v558 = vadd.f32 %v396, %v557
  %v559 = vpop.f32.mrb[0].mxu0
  %v560 = vadd.f32 %v400, %v559
  %v561 = vpop.f32.mrb[0].mxu0
  %v562 = vadd.f32 %v396, %v561
  %v563 = vpop.f32.mrb[0].mxu0
  %v564 = vadd.f32 %v400, %v563
  %565 = vmatprep.mubr.bf16.mxu0 0
  %566 = vmatmul.mubr.bf16.gmra.mrb[0].mxu0 %v364
  %v567 = vpop.f32.mrb[0].mxu0
  %v568 = vadd.f32 %v396, %v567
  %v569 = vpop.f32.mrb[0].mxu0
  %v570 = vadd.f32 %v400, %v569
  %v571 = vpop.f32.mrb[0].mxu0
  %v572 = vadd.f32 %v396, %v571
  %v573 = vpop.f32.mrb[0].mxu0
  %v574 = vadd.f32 %v400, %v573
  %575 = vmatprep.mubr.bf16.mxu0 0
  %576 = vmatmul.mubr.bf16.gmra.mrb[0].mxu0 %v365
  %v577 = vpop.f32.mrb[0].mxu0
  %v578 = vadd.f32 %v396, %v577
  %v579 = vpop.f32.mrb[0].mxu0
  %v580 = vadd.f32 %v400, %v579
  %v581 = vpop.f32.mrb[0].mxu0
  %v582 = vadd.f32 %v396, %v581
  %v583 = vpop.f32.mrb[0].mxu0
  %v584 = vadd.f32 %v400, %v583
  %585 = vmatprep.mubr.bf16.mxu0 0
  %586 = vmatmul.mubr.bf16.gmra.mrb[0].mxu0 %v366
  %v587 = vpop.f32.mrb[0].mxu0
  %v588 = vadd.f32 %v396, %v587
  %v589 = vpop.f32.mrb[0].mxu0
  %v590 = vadd.f32 %v400, %v589
  %v591 = vpop.f32.mrb[0].mxu0
  %v592 = vadd.f32 %v396, %v591
  %v593 = vpop.f32.mrb[0].mxu0
  %v594 = vadd.f32 %v400, %v593
  %595 = vmatprep.mubr.bf16.mxu0 0
  %596 = vmatmul.mubr.bf16.gmra.mrb[0].mxu0 %v367
  %v597 = vpop.f32.mrb[0].mxu0
  %v598 = vadd.f32 %v396, %v597
  %v599 = vpop.f32.mrb[0].mxu0
  %v600 = vadd.f32 %v400, %v599
  %v601 = vpop.f32.mrb[0].mxu0
  %v602 = vadd.f32 %v396, %v601
  %v603 = vpop.f32.mrb[0].mxu0
  %v604 = vadd.f32 %v400, %v603
  %605 = vmatprep.mubr.bf16.mxu0 0
  %606 = vmatmul.mubr.bf16.gmra.mrb[0].mxu0 %v368
  %v607 = vpop.f32.mrb[0].mxu0
  %v608 = vadd.f32 %v396, %v607
  %v609 = vpop.f32.mrb[0].mxu0
  %v610 = vadd.f32 %v400, %v609
  %v611 = vpop.f32.mrb[0].mxu0
  %v612 = vadd.f32 %v396, %v611
  %v613 = vpop.f32.mrb[0].mxu0
  %v614 = vadd.f32 %v400, %v613
  %615 = vmatprep.mubr.bf16.mxu0 0
  %616 = vmatmul.mubr.bf16.gmra.mrb[0].mxu0 %v369
  %v617 = vpop.f32.mrb[0].mxu0
  %v618 = vadd.f32 %v396, %v617
  %v619 = vpop.f32.mrb[0].mxu0
  %v620 = vadd.f32 %v400, %v619
  %v621 = vpop.f32.mrb[0].mxu0
  %v622 = vadd.f32 %v396, %v621
  %v623 = vpop.f32.mrb[0].mxu0
  %v624 = vadd.f32 %v400, %v623
  %625 = vmatprep.mubr.bf16.mxu0 0
  %626 = vmatmul.mubr.bf16.gmra.mrb[0].mxu0 %v370
  %v627 = vpop.f32.mrb[0].mxu0
  %v628 = vadd.f32 %v396, %v627
  %v629 = vpop.f32.mrb[0].mxu0
  %v630 = vadd.f32 %v400, %v629
  %v631 = vpop.f32.mrb[0].mxu0
  %v632 = vadd.f32 %v396, %v631
  %v633 = vpop.f32.mrb[0].mxu0
  %v634 = vadd.f32 %v400, %v633
  %635 = vmatprep.mubr.bf16.mxu0 0
  %636 = vmatmul.mubr.bf16.gmra.mrb[0].mxu0 %v371
  %v637 = vpop.f32.mrb[0].mxu0
  %v638 = vadd.f32 %v396, %v637
  %v639 = vpop.f32.mrb[0].mxu0
  %v640 = vadd.f32 %v400, %v639
  %v641 = vpop.f32.mrb[0].mxu0
  %v642 = vadd.f32 %v396, %v641
  %v643 = vpop.f32.mrb[0].mxu0
  %v644 = vadd.f32 %v400, %v643
  %645 = vmatprep.mubr.bf16.mxu0 0
  %646 = vmatmul.mubr.bf16.gmra.mrb[0].mxu0 %v372
  %v647 = vpop.f32.mrb[0].mxu0
  %v648 = vadd.f32 %v396, %v647
  %v649 = vpop.f32.mrb[0].mxu0
  %v650 = vadd.f32 %v400, %v649
  %v651 = vpop.f32.mrb[0].mxu0
  %v652 = vadd.f32 %v396, %v651
  %v653 = vpop.f32.mrb[0].mxu0
  %v654 = vadd.f32 %v400, %v653
  %655 = vmatprep.mubr.bf16.mxu0 0
  %656 = vmatmul.mubr.bf16.gmra.mrb[0].mxu0 %v373
  %v657 = vpop.f32.mrb[0].mxu0
  %v658 = vadd.f32 %v396, %v657
  %v659 = vpop.f32.mrb[0].mxu0
  %v660 = vadd.f32 %v400, %v659
  %v661 = vpop.f32.mrb[0].mxu0
  %v662 = vadd.f32 %v396, %v661
  %v663 = vpop.f32.mrb[0].mxu0
  %v664 = vadd.f32 %v400, %v663
  %665 = vmatprep.mubr.bf16.mxu0 0
  %666 = vmatmul.mubr.bf16.gmra.mrb[0].mxu0 %v374
  %v667 = vpop.f32.mrb[0].mxu0
  %v668 = vadd.f32 %v396, %v667
  %v669 = vpop.f32.mrb[0].mxu0
  %v670 = vadd.f32 %v400, %v669
  %v671 = vpop.f32.mrb[0].mxu0
  %v672 = vadd.f32 %v396, %v671
  %v673 = vpop.f32.mrb[0].mxu0
  %v674 = vadd.f32 %v400, %v673
  %675 = vdwg.mxu0
  %v676 = vmax.f32 %v518, 0.0
  %v677 = vmax.f32 %v520, 0.0
  %v678 = vmax.f32 %v522, 0.0
  %v679 = vmax.f32 %v524, 0.0
  %v680 = vmax.f32 %v528, 0.0
  %v681 = vmax.f32 %v530, 0.0
  %v682 = vmax.f32 %v532, 0.0
  %v683 = vmax.f32 %v534, 0.0
  %v684 = vmax.f32 %v538, 0.0
  %v685 = vmax.f32 %v540, 0.0
  %v686 = vmax.f32 %v542, 0.0
  %v687 = vmax.f32 %v544, 0.0
  %v688 = vmax.f32 %v548, 0.0
  %v689 = vmax.f32 %v550, 0.0
  %v690 = vmax.f32 %v552, 0.0
  %v691 = vmax.f32 %v554, 0.0
  %v692 = vmax.f32 %v558, 0.0
  %v693 = vmax.f32 %v560, 0.0
  %v694 = vmax.f32 %v562, 0.0
  %v695 = vmax.f32 %v564, 0.0
  %v696 = vmax.f32 %v568, 0.0
  %v697 = vmax.f32 %v570, 0.0
  %v698 = vmax.f32 %v572, 0.0
  %v699 = vmax.f32 %v574, 0.0
  %v700 = vmax.f32 %v578, 0.0
  %v701 = vmax.f32 %v580, 0.0
  %v702 = vmax.f32 %v582, 0.0
  %v703 = vmax.f32 %v584, 0.0
  %v704 = vmax.f32 %v588, 0.0
  %v705 = vmax.f32 %v590, 0.0
  %v706 = vmax.f32 %v592, 0.0
  %v707 = vmax.f32 %v594, 0.0
  %v708 = vmax.f32 %v598, 0.0
  %v709 = vmax.f32 %v600, 0.0
  %v710 = vmax.f32 %v602, 0.0
  %v711 = vmax.f32 %v604, 0.0
  %v712 = vmax.f32 %v608, 0.0
  %v713 = vmax.f32 %v610, 0.0
  %v714 = vmax.f32 %v612, 0.0
  %v715 = vmax.f32 %v614, 0.0
  %v716 = vmax.f32 %v618, 0.0
  %v717 = vmax.f32 %v620, 0.0
  %v718 = vmax.f32 %v622, 0.0
  %v719 = vmax.f32 %v624, 0.0
  %v720 = vmax.f32 %v628, 0.0
  %v721 = vmax.f32 %v630, 0.0
  %v722 = vmax.f32 %v632, 0.0
  %v723 = vmax.f32 %v634, 0.0
  %v724 = vmax.f32 %v638, 0.0
  %v725 = vmax.f32 %v640, 0.0
  %v726 = vmax.f32 %v642, 0.0
  %v727 = vmax.f32 %v644, 0.0
  %v728 = vmax.f32 %v648, 0.0
  %v729 = vmax.f32 %v650, 0.0
  %v730 = vmax.f32 %v652, 0.0
  %v731 = vmax.f32 %v654, 0.0
  %v732 = vmax.f32 %v658, 0.0
  %v733 = vmax.f32 %v660, 0.0
  %v734 = vmax.f32 %v662, 0.0
  %v735 = vmax.f32 %v664, 0.0
  %v736 = vmax.f32 %v668, 0.0
  %v737 = vmax.f32 %v670, 0.0
  %v738 = vmax.f32 %v672, 0.0
  %v739 = vmax.f32 %v674, 0.0
  %v740 = vpack.c.bf16 %v678, %v676
  %v741 = vpack.c.bf16 %v679, %v677
  %v742 = vpack.c.bf16 %v682, %v680
  %v743 = vpack.c.bf16 %v683, %v681
  %v744 = vpack.c.bf16 %v686, %v684
  %v745 = vpack.c.bf16 %v687, %v685
  %v746 = vpack.c.bf16 %v690, %v688
  %v747 = vpack.c.bf16 %v691, %v689
  %v748 = vpack.c.bf16 %v694, %v692
  %v749 = vpack.c.bf16 %v695, %v693
  %v750 = vpack.c.bf16 %v698, %v696
  %v751 = vpack.c.bf16 %v699, %v697
  %v752 = vpack.c.bf16 %v702, %v700
  %v753 = vpack.c.bf16 %v703, %v701
  %v754 = vpack.c.bf16 %v706, %v704
  %v755 = vpack.c.bf16 %v707, %v705
  %v756 = vpack.c.bf16 %v710, %v708
  %v757 = vpack.c.bf16 %v711, %v709
  %v758 = vpack.c.bf16 %v714, %v712
  %v759 = vpack.c.bf16 %v715, %v713
  %v760 = vpack.c.bf16 %v718, %v716
  %v761 = vpack.c.bf16 %v719, %v717
  %v762 = vpack.c.bf16 %v722, %v720
  %v763 = vpack.c.bf16 %v723, %v721
  %v764 = vpack.c.bf16 %v726, %v724
  %v765 = vpack.c.bf16 %v727, %v725
  %v766 = vpack.c.bf16 %v730, %v728
  %v767 = vpack.c.bf16 %v731, %v729
  %v768 = vpack.c.bf16 %v734, %v732
  %v769 = vpack.c.bf16 %v735, %v733
  %v770 = vpack.c.bf16 %v738, %v736
  %v771 = vpack.c.bf16 %v739, %v737
  %v772 = vld [vmem:[%s5] sm:$0xff]
  %v773 = vld [vmem:[%s5 + $0x8] sm:$0xff]
  %v774 = vld [vmem:[%s5 + $0x10] sm:$0xff]
  %v775 = vld [vmem:[%s5 + $0x18] sm:$0xff]
  %v776 = vld [vmem:[%s5 + $0x20] sm:$0xff]
  %v777 = vld [vmem:[%s5 + $0x28] sm:$0xff]
  %v778 = vld [vmem:[%s5 + $0x30] sm:$0xff]
  %v779 = vld [vmem:[%s5 + $0x38] sm:$0xff]
  %v780 = vld [vmem:[%s5 + $0x40] sm:$0xff]
  %v781 = vld [vmem:[%s5 + $0x48] sm:$0xff]
  %v782 = vld [vmem:[%s5 + $0x50] sm:$0xff]
  %v783 = vld [vmem:[%s5 + $0x58] sm:$0xff]
  %v784 = vld [vmem:[%s5 + $0x60] sm:$0xff]
  %v785 = vld [vmem:[%s5 + $0x68] sm:$0xff]
  %v786 = vld [vmem:[%s5 + $0x70] sm:$0xff]
  %v787 = vld [vmem:[%s5 + $0x78] sm:$0xff]
  %v788 = vld [vmem:[%s5 + $0x80] sm:$0xff]
  %v789 = vld [vmem:[%s5 + $0x88] sm:$0xff]
  %v790 = vld [vmem:[%s5 + $0x90] sm:$0xff]
  %v791 = vld [vmem:[%s5 + $0x98] sm:$0xff]
  %v792 = vld [vmem:[%s5 + $0xa0] sm:$0xff]
  %v793 = vld [vmem:[%s5 + $0xa8] sm:$0xff]
  %v794 = vld [vmem:[%s5 + $0xb0] sm:$0xff]
  %v795 = vld [vmem:[%s5 + $0xb8] sm:$0xff]
  %v796 = vld [vmem:[%s5 + $0xc0] sm:$0xff]
  %v797 = vld [vmem:[%s5 + $0xc8] sm:$0xff]
  %v798 = vld [vmem:[%s5 + $0xd0] sm:$0xff]
  %v799 = vld [vmem:[%s5 + $0xd8] sm:$0xff]
  %v800 = vld [vmem:[%s5 + $0xe0] sm:$0xff]
  %v801 = vld [vmem:[%s5 + $0xe8] sm:$0xff]
  %v802 = vld [vmem:[%s5 + $0xf0] sm:$0xff]
  %v803 = vld [vmem:[%s5 + $0xf8] sm:$0xff]
  %v804 = vld [vmem:[%s5 + $0x100] sm:$0xff]
  %v805 = vld [vmem:[%s5 + $0x108] sm:$0xff]
  %v806 = vld [vmem:[%s5 + $0x110] sm:$0xff]
  %v807 = vld [vmem:[%s5 + $0x118] sm:$0xff]
  %v808 = vld [vmem:[%s5 + $0x120] sm:$0xff]
  %v809 = vld [vmem:[%s5 + $0x128] sm:$0xff]
  %v810 = vld [vmem:[%s5 + $0x130] sm:$0xff]
  %v811 = vld [vmem:[%s5 + $0x138] sm:$0xff]
  %v812 = vld [vmem:[%s5 + $0x140] sm:$0xff]
  %v813 = vld [vmem:[%s5 + $0x148] sm:$0xff]
  %v814 = vld [vmem:[%s5 + $0x150] sm:$0xff]
  %v815 = vld [vmem:[%s5 + $0x158] sm:$0xff]
  %v816 = vld [vmem:[%s5 + $0x160] sm:$0xff]
  %v817 = vld [vmem:[%s5 + $0x168] sm:$0xff]
  %v818 = vld [vmem:[%s5 + $0x170] sm:$0xff]
  %v819 = vld [vmem:[%s5 + $0x178] sm:$0xff]
  %v820 = vld [vmem:[%s5 + $0x180] sm:$0xff]
  %v821 = vld [vmem:[%s5 + $0x188] sm:$0xff]
  %v822 = vld [vmem:[%s5 + $0x190] sm:$0xff]
  %v823 = vld [vmem:[%s5 + $0x198] sm:$0xff]
  %v824 = vld [vmem:[%s5 + $0x1a0] sm:$0xff]
  %v825 = vld [vmem:[%s5 + $0x1a8] sm:$0xff]
  %v826 = vld [vmem:[%s5 + $0x1b0] sm:$0xff]
  %v827 = vld [vmem:[%s5 + $0x1b8] sm:$0xff]
  %v828 = vld [vmem:[%s5 + $0x1c0] sm:$0xff]
  %v829 = vld [vmem:[%s5 + $0x1c8] sm:$0xff]
  %v830 = vld [vmem:[%s5 + $0x1d0] sm:$0xff]
  %v831 = vld [vmem:[%s5 + $0x1d8] sm:$0xff]
  %v832 = vld [vmem:[%s5 + $0x1e0] sm:$0xff]
  %v833 = vld [vmem:[%s5 + $0x1e8] sm:$0xff]
  %v834 = vld [vmem:[%s5 + $0x1f0] sm:$0xff]
  %v835 = vld [vmem:[%s5 + $0x1f8] sm:$0xff]
  %v836 = vld [vmem:[%s6] sm:$0xf]
  %v838 = vlaneseq
  %v839 = vshrl.u32 %v838, 7
  %v840 = vsub.s32 0, %v839
  %v841 = vrot.slane %v836, %v840
  %v842 = vlaneseq
  %v843 = vshrl.u32 %v842, 7
  %v844 = vsub.s32 1, %v843
  %v845 = vrot.slane %v836, %v844
  %v846 = vlaneseq
  %v847 = vshrl.u32 %v846, 7
  %v848 = vsub.s32 2, %v847
  %v849 = vrot.slane %v836, %v848
  %v850 = vlaneseq
  %v851 = vshrl.u32 %v850, 7
  %v852 = vsub.s32 3, %v851
  %v853 = vrot.slane %v836, %v852
  %v922 = vunpack.c.l.b16 %v772
  %v923 = vunpack.c.h.b16 %v772
  %v924 = vunpack.c.l.b16 %v773
  %v925 = vunpack.c.h.b16 %v773
  %v926 = vunpack.c.l.b16 %v774
  %v927 = vunpack.c.h.b16 %v774
  %v928 = vunpack.c.l.b16 %v775
  %v929 = vunpack.c.h.b16 %v775
  %v930 = vunpack.c.l.b16 %v776
  %v931 = vunpack.c.h.b16 %v776
  %v932 = vunpack.c.l.b16 %v777
  %v933 = vunpack.c.h.b16 %v777
  %v934 = vunpack.c.l.b16 %v778
  %v935 = vunpack.c.h.b16 %v778
  %v936 = vunpack.c.l.b16 %v779
  %v937 = vunpack.c.h.b16 %v779
  %v938 = vunpack.c.l.b16 %v780
  %v939 = vunpack.c.h.b16 %v780
  %v940 = vunpack.c.l.b16 %v781
  %v941 = vunpack.c.h.b16 %v781
  %v942 = vunpack.c.l.b16 %v782
  %v943 = vunpack.c.h.b16 %v782
  %v944 = vunpack.c.l.b16 %v783
  %v945 = vunpack.c.h.b16 %v783
  %v946 = vunpack.c.l.b16 %v784
  %v947 = vunpack.c.h.b16 %v784
  %v948 = vunpack.c.l.b16 %v785
  %v949 = vunpack.c.h.b16 %v785
  %v950 = vunpack.c.l.b16 %v786
  %v951 = vunpack.c.h.b16 %v786
  %v952 = vunpack.c.l.b16 %v787
  %v953 = vunpack.c.h.b16 %v787
  %v954 = vunpack.c.l.b16 %v788
  %v955 = vunpack.c.h.b16 %v788
  %v956 = vunpack.c.l.b16 %v789
  %v957 = vunpack.c.h.b16 %v789
  %v958 = vunpack.c.l.b16 %v790
  %v959 = vunpack.c.h.b16 %v790
  %v960 = vunpack.c.l.b16 %v791
  %v961 = vunpack.c.h.b16 %v791
  %v962 = vunpack.c.l.b16 %v792
  %v963 = vunpack.c.h.b16 %v792
  %v964 = vunpack.c.l.b16 %v793
  %v965 = vunpack.c.h.b16 %v793
  %v966 = vunpack.c.l.b16 %v794
  %v967 = vunpack.c.h.b16 %v794
  %v968 = vunpack.c.l.b16 %v795
  %v969 = vunpack.c.h.b16 %v795
  %v970 = vunpack.c.l.b16 %v796
  %v971 = vunpack.c.h.b16 %v796
  %v972 = vunpack.c.l.b16 %v797
  %v973 = vunpack.c.h.b16 %v797
  %v974 = vunpack.c.l.b16 %v798
  %v975 = vunpack.c.h.b16 %v798
  %v976 = vunpack.c.l.b16 %v799
  %v977 = vunpack.c.h.b16 %v799
  %v978 = vunpack.c.l.b16 %v800
  %v979 = vunpack.c.h.b16 %v800
  %v980 = vunpack.c.l.b16 %v801
  %v981 = vunpack.c.h.b16 %v801
  %v982 = vunpack.c.l.b16 %v802
  %v983 = vunpack.c.h.b16 %v802
  %v984 = vunpack.c.l.b16 %v803
  %v985 = vunpack.c.h.b16 %v803
  %v986 = vunpack.c.l.b16 %v804
  %v987 = vunpack.c.h.b16 %v804
  %v988 = vunpack.c.l.b16 %v805
  %v989 = vunpack.c.h.b16 %v805
  %v990 = vunpack.c.l.b16 %v806
  %v991 = vunpack.c.h.b16 %v806
  %v992 = vunpack.c.l.b16 %v807
  %v993 = vunpack.c.h.b16 %v807
  %v994 = vunpack.c.l.b16 %v808
  %v995 = vunpack.c.h.b16 %v808
  %v996 = vunpack.c.l.b16 %v809
  %v997 = vunpack.c.h.b16 %v809
  %v998 = vunpack.c.l.b16 %v810
  %v999 = vunpack.c.h.b16 %v810
  %v1000 = vunpack.c.l.b16 %v811
  %v1001 = vunpack.c.h.b16 %v811
  %v1002 = vunpack.c.l.b16 %v812
  %v1003 = vunpack.c.h.b16 %v812
  %v1004 = vunpack.c.l.b16 %v813
  %v1005 = vunpack.c.h.b16 %v813
  %v1006 = vunpack.c.l.b16 %v814
  %v1007 = vunpack.c.h.b16 %v814
  %v1008 = vunpack.c.l.b16 %v815
  %v1009 = vunpack.c.h.b16 %v815
  %v1010 = vunpack.c.l.b16 %v816
  %v1011 = vunpack.c.h.b16 %v816
  %v1012 = vunpack.c.l.b16 %v817
  %v1013 = vunpack.c.h.b16 %v817
  %v1014 = vunpack.c.l.b16 %v818
  %v1015 = vunpack.c.h.b16 %v818
  %v1016 = vunpack.c.l.b16 %v819
  %v1017 = vunpack.c.h.b16 %v819
  %v1018 = vunpack.c.l.b16 %v820
  %v1019 = vunpack.c.h.b16 %v820
  %v1020 = vunpack.c.l.b16 %v821
  %v1021 = vunpack.c.h.b16 %v821
  %v1022 = vunpack.c.l.b16 %v822
  %v1023 = vunpack.c.h.b16 %v822
  %v1024 = vunpack.c.l.b16 %v823
  %v1025 = vunpack.c.h.b16 %v823
  %v1026 = vunpack.c.l.b16 %v824
  %v1027 = vunpack.c.h.b16 %v824
  %v1028 = vunpack.c.l.b16 %v825
  %v1029 = vunpack.c.h.b16 %v825
  %v1030 = vunpack.c.l.b16 %v826
  %v1031 = vunpack.c.h.b16 %v826
  %v1032 = vunpack.c.l.b16 %v827
  %v1033 = vunpack.c.h.b16 %v827
  %v1034 = vunpack.c.l.b16 %v828
  %v1035 = vunpack.c.h.b16 %v828
  %v1036 = vunpack.c.l.b16 %v829
  %v1037 = vunpack.c.h.b16 %v829
  %v1038 = vunpack.c.l.b16 %v830
  %v1039 = vunpack.c.h.b16 %v830
  %v1040 = vunpack.c.l.b16 %v831
  %v1041 = vunpack.c.h.b16 %v831
  %v1042 = vunpack.c.l.b16 %v832
  %v1043 = vunpack.c.h.b16 %v832
  %v1044 = vunpack.c.l.b16 %v833
  %v1045 = vunpack.c.h.b16 %v833
  %v1046 = vunpack.c.l.b16 %v834
  %v1047 = vunpack.c.h.b16 %v834
  %v1048 = vunpack.c.l.b16 %v835
  %v1049 = vunpack.c.h.b16 %v835
  %v1050 = vpack.c.b16 %v926, %v922
  %v1051 = vpack.c.b16 %v927, %v923
  %v1052 = vpack.c.b16 %v928, %v924
  %v1053 = vpack.c.b16 %v929, %v925
  %v1054 = vpack.c.b16 %v934, %v930
  %v1055 = vpack.c.b16 %v935, %v931
  %v1056 = vpack.c.b16 %v936, %v932
  %v1057 = vpack.c.b16 %v937, %v933
  %v1058 = vpack.c.b16 %v942, %v938
  %v1059 = vpack.c.b16 %v943, %v939
  %v1060 = vpack.c.b16 %v944, %v940
  %v1061 = vpack.c.b16 %v945, %v941
  %v1062 = vpack.c.b16 %v950, %v946
  %v1063 = vpack.c.b16 %v951, %v947
  %v1064 = vpack.c.b16 %v952, %v948
  %v1065 = vpack.c.b16 %v953, %v949
  %v1066 = vpack.c.b16 %v958, %v954
  %v1067 = vpack.c.b16 %v959, %v955
  %v1068 = vpack.c.b16 %v960, %v956
  %v1069 = vpack.c.b16 %v961, %v957
  %v1070 = vpack.c.b16 %v966, %v962
  %v1071 = vpack.c.b16 %v967, %v963
  %v1072 = vpack.c.b16 %v968, %v964
  %v1073 = vpack.c.b16 %v969, %v965
  %v1074 = vpack.c.b16 %v974, %v970
  %v1075 = vpack.c.b16 %v975, %v971
  %v1076 = vpack.c.b16 %v976, %v972
  %v1077 = vpack.c.b16 %v977, %v973
  %v1078 = vpack.c.b16 %v982, %v978
  %v1079 = vpack.c.b16 %v983, %v979
  %v1080 = vpack.c.b16 %v984, %v980
  %v1081 = vpack.c.b16 %v985, %v981
  %v1082 = vpack.c.b16 %v990, %v986
  %v1083 = vpack.c.b16 %v991, %v987
  %v1084 = vpack.c.b16 %v992, %v988
  %v1085 = vpack.c.b16 %v993, %v989
  %v1086 = vpack.c.b16 %v998, %v994
  %v1087 = vpack.c.b16 %v999, %v995
  %v1088 = vpack.c.b16 %v1000, %v996
  %v1089 = vpack.c.b16 %v1001, %v997
  %v1090 = vpack.c.b16 %v1006, %v1002
  %v1091 = vpack.c.b16 %v1007, %v1003
  %v1092 = vpack.c.b16 %v1008, %v1004
  %v1093 = vpack.c.b16 %v1009, %v1005
  %v1094 = vpack.c.b16 %v1014, %v1010
  %v1095 = vpack.c.b16 %v1015, %v1011
  %v1096 = vpack.c.b16 %v1016, %v1012
  %v1097 = vpack.c.b16 %v1017, %v1013
  %v1098 = vpack.c.b16 %v1022, %v1018
  %v1099 = vpack.c.b16 %v1023, %v1019
  %v1100 = vpack.c.b16 %v1024, %v1020
  %v1101 = vpack.c.b16 %v1025, %v1021
  %v1102 = vpack.c.b16 %v1030, %v1026
  %v1103 = vpack.c.b16 %v1031, %v1027
  %v1104 = vpack.c.b16 %v1032, %v1028
  %v1105 = vpack.c.b16 %v1033, %v1029
  %v1106 = vpack.c.b16 %v1038, %v1034
  %v1107 = vpack.c.b16 %v1039, %v1035
  %v1108 = vpack.c.b16 %v1040, %v1036
  %v1109 = vpack.c.b16 %v1041, %v1037
  %v1110 = vpack.c.b16 %v1046, %v1042
  %v1111 = vpack.c.b16 %v1047, %v1043
  %v1112 = vpack.c.b16 %v1048, %v1044
  %v1113 = vpack.c.b16 %v1049, %v1045
  %1178 = vmatprep.subr.bf16.mxu0 %v1051
  %1179 = vmatpush1.bf16.msra.mxu0 %v1050
  %1180 = vmatprep.subr.bf16.mxu0 %v1055
  %1181 = vmatpush1.bf16.msra.mxu0 %v1054
  %1182 = vmatprep.subr.bf16.mxu0 %v1059
  %1183 = vmatpush1.bf16.msra.mxu0 %v1058
  %1184 = vmatprep.subr.bf16.mxu0 %v1063
  %1185 = vmatpush1.bf16.msra.mxu0 %v1062
  %1186 = vmatprep.subr.bf16.mxu0 %v1067
  %1187 = vmatpush1.bf16.msra.mxu0 %v1066
  %1188 = vmatprep.subr.bf16.mxu0 %v1071
  %1189 = vmatpush1.bf16.msra.mxu0 %v1070
  %1190 = vmatprep.subr.bf16.mxu0 %v1075
  %1191 = vmatpush1.bf16.msra.mxu0 %v1074
  %1192 = vmatprep.subr.bf16.mxu0 %v1079
  %1193 = vmatpush1.bf16.msra.mxu0 %v1078
  %1194 = vmatprep.subr.bf16.mxu0 %v1083
  %1195 = vmatpush1.bf16.msra.mxu0 %v1082
  %1196 = vmatprep.subr.bf16.mxu0 %v1087
  %1197 = vmatpush1.bf16.msra.mxu0 %v1086
  %1198 = vmatprep.subr.bf16.mxu0 %v1091
  %1199 = vmatpush1.bf16.msra.mxu0 %v1090
  %1200 = vmatprep.subr.bf16.mxu0 %v1095
  %1201 = vmatpush1.bf16.msra.mxu0 %v1094
  %1202 = vmatprep.subr.bf16.mxu0 %v1099
  %1203 = vmatpush1.bf16.msra.mxu0 %v1098
  %1204 = vmatprep.subr.bf16.mxu0 %v1103
  %1205 = vmatpush1.bf16.msra.mxu0 %v1102
  %1206 = vmatprep.subr.bf16.mxu0 %v1107
  %1207 = vmatpush1.bf16.msra.mxu0 %v1106
  %1208 = vmatprep.subr.bf16.mxu0 %v1111
  %1209 = vmatpush1.bf16.msra.mxu0 %v1110
  %1210 = vmatprep.mubr.bf16.mxu0 %v741
  %1211 = vmatmul.mubr.bf16.gmra.mrb[0].mxu0 %v740
  %v1212 = vpop.f32.mrb[0].mxu0
  %v1213 = vadd.f32 %v841, %v1212
  %v1214 = vpop.f32.mrb[0].mxu0
  %v1215 = vadd.f32 %v845, %v1214
  %v1216 = vpop.f32.mrb[0].mxu0
  %v1217 = vadd.f32 %v841, %v1216
  %v1218 = vpop.f32.mrb[0].mxu0
  %v1219 = vadd.f32 %v845, %v1218
  %1220 = vmatprep.mubr.bf16.mxu0 %v743
  %1221 = vmatmul.mubr.bf16.gmra.mrb[0].mxu0 %v742
  %v1222 = vpop.f32.mrb[0].mxu0
  %v1223 = vadd.f32 %v841, %v1222
  %v1224 = vpop.f32.mrb[0].mxu0
  %v1225 = vadd.f32 %v845, %v1224
  %v1226 = vpop.f32.mrb[0].mxu0
  %v1227 = vadd.f32 %v841, %v1226
  %v1228 = vpop.f32.mrb[0].mxu0
  %v1229 = vadd.f32 %v845, %v1228
  %1230 = vmatprep.mubr.bf16.mxu0 %v745
  %1231 = vmatmul.mubr.bf16.gmra.mrb[0].mxu0 %v744
  %v1232 = vpop.f32.mrb[0].mxu0
  %v1233 = vadd.f32 %v841, %v1232
  %v1234 = vpop.f32.mrb[0].mxu0
  %v1235 = vadd.f32 %v845, %v1234
  %v1236 = vpop.f32.mrb[0].mxu0
  %v1237 = vadd.f32 %v841, %v1236
  %v1238 = vpop.f32.mrb[0].mxu0
  %v1239 = vadd.f32 %v845, %v1238
  %1240 = vmatprep.mubr.bf16.mxu0 %v747
  %1241 = vmatmul.mubr.bf16.gmra.mrb[0].mxu0 %v746
  %v1242 = vpop.f32.mrb[0].mxu0
  %v1243 = vadd.f32 %v841, %v1242
  %v1244 = vpop.f32.mrb[0].mxu0
  %v1245 = vadd.f32 %v845, %v1244
  %v1246 = vpop.f32.mrb[0].mxu0
  %v1247 = vadd.f32 %v841, %v1246
  %v1248 = vpop.f32.mrb[0].mxu0
  %v1249 = vadd.f32 %v845, %v1248
  %1250 = vmatprep.mubr.bf16.mxu0 %v749
  %1251 = vmatmul.mubr.bf16.gmra.mrb[0].mxu0 %v748
  %v1252 = vpop.f32.mrb[0].mxu0
  %v1253 = vadd.f32 %v841, %v1252
  %v1254 = vpop.f32.mrb[0].mxu0
  %v1255 = vadd.f32 %v845, %v1254
  %v1256 = vpop.f32.mrb[0].mxu0
  %v1257 = vadd.f32 %v841, %v1256
  %v1258 = vpop.f32.mrb[0].mxu0
  %v1259 = vadd.f32 %v845, %v1258
  %1260 = vmatprep.mubr.bf16.mxu0 %v751
  %1261 = vmatmul.mubr.bf16.gmra.mrb[0].mxu0 %v750
  %v1262 = vpop.f32.mrb[0].mxu0
  %v1263 = vadd.f32 %v841, %v1262
  %v1264 = vpop.f32.mrb[0].mxu0
  %v1265 = vadd.f32 %v845, %v1264
  %v1266 = vpop.f32.mrb[0].mxu0
  %v1267 = vadd.f32 %v841, %v1266
  %v1268 = vpop.f32.mrb[0].mxu0
  %v1269 = vadd.f32 %v845, %v1268
  %1270 = vmatprep.mubr.bf16.mxu0 %v753
  %1271 = vmatmul.mubr.bf16.gmra.mrb[0].mxu0 %v752
  %v1272 = vpop.f32.mrb[0].mxu0
  %v1273 = vadd.f32 %v841, %v1272
  %v1274 = vpop.f32.mrb[0].mxu0
  %v1275 = vadd.f32 %v845, %v1274
  %v1276 = vpop.f32.mrb[0].mxu0
  %v1277 = vadd.f32 %v841, %v1276
  %v1278 = vpop.f32.mrb[0].mxu0
  %v1279 = vadd.f32 %v845, %v1278
  %1280 = vmatprep.mubr.bf16.mxu0 %v755
  %1281 = vmatmul.mubr.bf16.gmra.mrb[0].mxu0 %v754
  %v1282 = vpop.f32.mrb[0].mxu0
  %v1283 = vadd.f32 %v841, %v1282
  %v1284 = vpop.f32.mrb[0].mxu0
  %v1285 = vadd.f32 %v845, %v1284
  %v1286 = vpop.f32.mrb[0].mxu0
  %v1287 = vadd.f32 %v841, %v1286
  %v1288 = vpop.f32.mrb[0].mxu0
  %v1289 = vadd.f32 %v845, %v1288
  %1290 = vmatprep.mubr.bf16.mxu0 %v757
  %1291 = vmatmul.mubr.bf16.gmra.mrb[0].mxu0 %v756
  %v1292 = vpop.f32.mrb[0].mxu0
  %v1293 = vadd.f32 %v841, %v1292
  %v1294 = vpop.f32.mrb[0].mxu0
  %v1295 = vadd.f32 %v845, %v1294
  %v1296 = vpop.f32.mrb[0].mxu0
  %v1297 = vadd.f32 %v841, %v1296
  %v1298 = vpop.f32.mrb[0].mxu0
  %v1299 = vadd.f32 %v845, %v1298
  %1300 = vmatprep.mubr.bf16.mxu0 %v759
  %1301 = vmatmul.mubr.bf16.gmra.mrb[0].mxu0 %v758
  %v1302 = vpop.f32.mrb[0].mxu0
  %v1303 = vadd.f32 %v841, %v1302
  %v1304 = vpop.f32.mrb[0].mxu0
  %v1305 = vadd.f32 %v845, %v1304
  %v1306 = vpop.f32.mrb[0].mxu0
  %v1307 = vadd.f32 %v841, %v1306
  %v1308 = vpop.f32.mrb[0].mxu0
  %v1309 = vadd.f32 %v845, %v1308
  %1310 = vmatprep.mubr.bf16.mxu0 %v761
  %1311 = vmatmul.mubr.bf16.gmra.mrb[0].mxu0 %v760
  %v1312 = vpop.f32.mrb[0].mxu0
  %v1313 = vadd.f32 %v841, %v1312
  %v1314 = vpop.f32.mrb[0].mxu0
  %v1315 = vadd.f32 %v845, %v1314
  %v1316 = vpop.f32.mrb[0].mxu0
  %v1317 = vadd.f32 %v841, %v1316
  %v1318 = vpop.f32.mrb[0].mxu0
  %v1319 = vadd.f32 %v845, %v1318
  %1320 = vmatprep.mubr.bf16.mxu0 %v763
  %1321 = vmatmul.mubr.bf16.gmra.mrb[0].mxu0 %v762
  %v1322 = vpop.f32.mrb[0].mxu0
  %v1323 = vadd.f32 %v841, %v1322
  %v1324 = vpop.f32.mrb[0].mxu0
  %v1325 = vadd.f32 %v845, %v1324
  %v1326 = vpop.f32.mrb[0].mxu0
  %v1327 = vadd.f32 %v841, %v1326
  %v1328 = vpop.f32.mrb[0].mxu0
  %v1329 = vadd.f32 %v845, %v1328
  %1330 = vmatprep.mubr.bf16.mxu0 %v765
  %1331 = vmatmul.mubr.bf16.gmra.mrb[0].mxu0 %v764
  %v1332 = vpop.f32.mrb[0].mxu0
  %v1333 = vadd.f32 %v841, %v1332
  %v1334 = vpop.f32.mrb[0].mxu0
  %v1335 = vadd.f32 %v845, %v1334
  %v1336 = vpop.f32.mrb[0].mxu0
  %v1337 = vadd.f32 %v841, %v1336
  %v1338 = vpop.f32.mrb[0].mxu0
  %v1339 = vadd.f32 %v845, %v1338
  %1340 = vmatprep.mubr.bf16.mxu0 %v767
  %1341 = vmatmul.mubr.bf16.gmra.mrb[0].mxu0 %v766
  %v1342 = vpop.f32.mrb[0].mxu0
  %v1343 = vadd.f32 %v841, %v1342
  %v1344 = vpop.f32.mrb[0].mxu0
  %v1345 = vadd.f32 %v845, %v1344
  %v1346 = vpop.f32.mrb[0].mxu0
  %v1347 = vadd.f32 %v841, %v1346
  %v1348 = vpop.f32.mrb[0].mxu0
  %v1349 = vadd.f32 %v845, %v1348
  %1350 = vmatprep.mubr.bf16.mxu0 %v769
  %1351 = vmatmul.mubr.bf16.gmra.mrb[0].mxu0 %v768
  %v1352 = vpop.f32.mrb[0].mxu0
  %v1353 = vadd.f32 %v841, %v1352
  %v1354 = vpop.f32.mrb[0].mxu0
  %v1355 = vadd.f32 %v845, %v1354
  %v1356 = vpop.f32.mrb[0].mxu0
  %v1357 = vadd.f32 %v841, %v1356
  %v1358 = vpop.f32.mrb[0].mxu0
  %v1359 = vadd.f32 %v845, %v1358
  %1360 = vmatprep.mubr.bf16.mxu0 %v771
  %1361 = vmatmul.mubr.bf16.gmra.mrb[0].mxu0 %v770
  %v1362 = vpop.f32.mrb[0].mxu0
  %v1363 = vadd.f32 %v841, %v1362
  %v1364 = vpop.f32.mrb[0].mxu0
  %v1365 = vadd.f32 %v845, %v1364
  %v1366 = vpop.f32.mrb[0].mxu0
  %v1367 = vadd.f32 %v841, %v1366
  %v1368 = vpop.f32.mrb[0].mxu0
  %v1369 = vadd.f32 %v845, %v1368
  %1370 = vdwg.mxu0
  %1371 = vmatprep.subr.bf16.mxu0 %v1053
  %1372 = vmatpush1.bf16.msra.mxu0 %v1052
  %1373 = vmatprep.subr.bf16.mxu0 %v1057
  %1374 = vmatpush1.bf16.msra.mxu0 %v1056
  %1375 = vmatprep.subr.bf16.mxu0 %v1061
  %1376 = vmatpush1.bf16.msra.mxu0 %v1060
  %1377 = vmatprep.subr.bf16.mxu0 %v1065
  %1378 = vmatpush1.bf16.msra.mxu0 %v1064
  %1379 = vmatprep.subr.bf16.mxu0 %v1069
  %1380 = vmatpush1.bf16.msra.mxu0 %v1068
  %1381 = vmatprep.subr.bf16.mxu0 %v1073
  %1382 = vmatpush1.bf16.msra.mxu0 %v1072
  %1383 = vmatprep.subr.bf16.mxu0 %v1077
  %1384 = vmatpush1.bf16.msra.mxu0 %v1076
  %1385 = vmatprep.subr.bf16.mxu0 %v1081
  %1386 = vmatpush1.bf16.msra.mxu0 %v1080
  %1387 = vmatprep.subr.bf16.mxu0 %v1085
  %1388 = vmatpush1.bf16.msra.mxu0 %v1084
  %1389 = vmatprep.subr.bf16.mxu0 %v1089
  %1390 = vmatpush1.bf16.msra.mxu0 %v1088
  %1391 = vmatprep.subr.bf16.mxu0 %v1093
  %1392 = vmatpush1.bf16.msra.mxu0 %v1092
  %1393 = vmatprep.subr.bf16.mxu0 %v1097
  %1394 = vmatpush1.bf16.msra.mxu0 %v1096
  %1395 = vmatprep.subr.bf16.mxu0 %v1101
  %1396 = vmatpush1.bf16.msra.mxu0 %v1100
  %1397 = vmatprep.subr.bf16.mxu0 %v1105
  %1398 = vmatpush1.bf16.msra.mxu0 %v1104
  %1399 = vmatprep.subr.bf16.mxu0 %v1109
  %1400 = vmatpush1.bf16.msra.mxu0 %v1108
  %1401 = vmatprep.subr.bf16.mxu0 %v1113
  %1402 = vmatpush1.bf16.msra.mxu0 %v1112
  %1403 = vmatprep.mubr.bf16.mxu0 %v741
  %1404 = vmatmul.mubr.bf16.gmra.mrb[0].mxu0 %v740
  %v1405 = vpop.f32.mrb[0].mxu0
  %v1406 = vadd.f32 %v849, %v1405
  %v1407 = vpop.f32.mrb[0].mxu0
  %v1408 = vadd.f32 %v853, %v1407
  %v1409 = vpop.f32.mrb[0].mxu0
  %v1410 = vadd.f32 %v849, %v1409
  %v1411 = vpop.f32.mrb[0].mxu0
  %v1412 = vadd.f32 %v853, %v1411
  %1413 = vmatprep.mubr.bf16.mxu0 %v743
  %1414 = vmatmul.mubr.bf16.gmra.mrb[0].mxu0 %v742
  %v1415 = vpop.f32.mrb[0].mxu0
  %v1416 = vadd.f32 %v849, %v1415
  %v1417 = vpop.f32.mrb[0].mxu0
  %v1418 = vadd.f32 %v853, %v1417
  %v1419 = vpop.f32.mrb[0].mxu0
  %v1420 = vadd.f32 %v849, %v1419
  %v1421 = vpop.f32.mrb[0].mxu0
  %v1422 = vadd.f32 %v853, %v1421
  %1423 = vmatprep.mubr.bf16.mxu0 %v745
  %1424 = vmatmul.mubr.bf16.gmra.mrb[0].mxu0 %v744
  %v1425 = vpop.f32.mrb[0].mxu0
  %v1426 = vadd.f32 %v849, %v1425
  %v1427 = vpop.f32.mrb[0].mxu0
  %v1428 = vadd.f32 %v853, %v1427
  %v1429 = vpop.f32.mrb[0].mxu0
  %v1430 = vadd.f32 %v849, %v1429
  %v1431 = vpop.f32.mrb[0].mxu0
  %v1432 = vadd.f32 %v853, %v1431
  %1433 = vmatprep.mubr.bf16.mxu0 %v747
  %1434 = vmatmul.mubr.bf16.gmra.mrb[0].mxu0 %v746
  %v1435 = vpop.f32.mrb[0].mxu0
  %v1436 = vadd.f32 %v849, %v1435
  %v1437 = vpop.f32.mrb[0].mxu0
  %v1438 = vadd.f32 %v853, %v1437
  %v1439 = vpop.f32.mrb[0].mxu0
  %v1440 = vadd.f32 %v849, %v1439
  %v1441 = vpop.f32.mrb[0].mxu0
  %v1442 = vadd.f32 %v853, %v1441
  %1443 = vmatprep.mubr.bf16.mxu0 %v749
  %1444 = vmatmul.mubr.bf16.gmra.mrb[0].mxu0 %v748
  %v1445 = vpop.f32.mrb[0].mxu0
  %v1446 = vadd.f32 %v849, %v1445
  %v1447 = vpop.f32.mrb[0].mxu0
  %v1448 = vadd.f32 %v853, %v1447
  %v1449 = vpop.f32.mrb[0].mxu0
  %v1450 = vadd.f32 %v849, %v1449
  %v1451 = vpop.f32.mrb[0].mxu0
  %v1452 = vadd.f32 %v853, %v1451
  %1453 = vmatprep.mubr.bf16.mxu0 %v751
  %1454 = vmatmul.mubr.bf16.gmra.mrb[0].mxu0 %v750
  %v1455 = vpop.f32.mrb[0].mxu0
  %v1456 = vadd.f32 %v849, %v1455
  %v1457 = vpop.f32.mrb[0].mxu0
  %v1458 = vadd.f32 %v853, %v1457
  %v1459 = vpop.f32.mrb[0].mxu0
  %v1460 = vadd.f32 %v849, %v1459
  %v1461 = vpop.f32.mrb[0].mxu0
  %v1462 = vadd.f32 %v853, %v1461
  %1463 = vmatprep.mubr.bf16.mxu0 %v753
  %1464 = vmatmul.mubr.bf16.gmra.mrb[0].mxu0 %v752
  %v1465 = vpop.f32.mrb[0].mxu0
  %v1466 = vadd.f32 %v849, %v1465
  %v1467 = vpop.f32.mrb[0].mxu0
  %v1468 = vadd.f32 %v853, %v1467
  %v1469 = vpop.f32.mrb[0].mxu0
  %v1470 = vadd.f32 %v849, %v1469
  %v1471 = vpop.f32.mrb[0].mxu0
  %v1472 = vadd.f32 %v853, %v1471
  %1473 = vmatprep.mubr.bf16.mxu0 %v755
  %1474 = vmatmul.mubr.bf16.gmra.mrb[0].mxu0 %v754
  %v1475 = vpop.f32.mrb[0].mxu0
  %v1476 = vadd.f32 %v849, %v1475
  %v1477 = vpop.f32.mrb[0].mxu0
  %v1478 = vadd.f32 %v853, %v1477
  %v1479 = vpop.f32.mrb[0].mxu0
  %v1480 = vadd.f32 %v849, %v1479
  %v1481 = vpop.f32.mrb[0].mxu0
  %v1482 = vadd.f32 %v853, %v1481
  %1483 = vmatprep.mubr.bf16.mxu0 %v757
  %1484 = vmatmul.mubr.bf16.gmra.mrb[0].mxu0 %v756
  %v1485 = vpop.f32.mrb[0].mxu0
  %v1486 = vadd.f32 %v849, %v1485
  %v1487 = vpop.f32.mrb[0].mxu0
  %v1488 = vadd.f32 %v853, %v1487
  %v1489 = vpop.f32.mrb[0].mxu0
  %v1490 = vadd.f32 %v849, %v1489
  %v1491 = vpop.f32.mrb[0].mxu0
  %v1492 = vadd.f32 %v853, %v1491
  %1493 = vmatprep.mubr.bf16.mxu0 %v759
  %1494 = vmatmul.mubr.bf16.gmra.mrb[0].mxu0 %v758
  %v1495 = vpop.f32.mrb[0].mxu0
  %v1496 = vadd.f32 %v849, %v1495
  %v1497 = vpop.f32.mrb[0].mxu0
  %v1498 = vadd.f32 %v853, %v1497
  %v1499 = vpop.f32.mrb[0].mxu0
  %v1500 = vadd.f32 %v849, %v1499
  %v1501 = vpop.f32.mrb[0].mxu0
  %v1502 = vadd.f32 %v853, %v1501
  %1503 = vmatprep.mubr.bf16.mxu0 %v761
  %1504 = vmatmul.mubr.bf16.gmra.mrb[0].mxu0 %v760
  %v1505 = vpop.f32.mrb[0].mxu0
  %v1506 = vadd.f32 %v849, %v1505
  %v1507 = vpop.f32.mrb[0].mxu0
  %v1508 = vadd.f32 %v853, %v1507
  %v1509 = vpop.f32.mrb[0].mxu0
  %v1510 = vadd.f32 %v849, %v1509
  %v1511 = vpop.f32.mrb[0].mxu0
  %v1512 = vadd.f32 %v853, %v1511
  %1513 = vmatprep.mubr.bf16.mxu0 %v763
  %1514 = vmatmul.mubr.bf16.gmra.mrb[0].mxu0 %v762
  %v1515 = vpop.f32.mrb[0].mxu0
  %v1516 = vadd.f32 %v849, %v1515
  %v1517 = vpop.f32.mrb[0].mxu0
  %v1518 = vadd.f32 %v853, %v1517
  %v1519 = vpop.f32.mrb[0].mxu0
  %v1520 = vadd.f32 %v849, %v1519
  %v1521 = vpop.f32.mrb[0].mxu0
  %v1522 = vadd.f32 %v853, %v1521
  %1523 = vmatprep.mubr.bf16.mxu0 %v765
  %1524 = vmatmul.mubr.bf16.gmra.mrb[0].mxu0 %v764
  %v1525 = vpop.f32.mrb[0].mxu0
  %v1526 = vadd.f32 %v849, %v1525
  %v1527 = vpop.f32.mrb[0].mxu0
  %v1528 = vadd.f32 %v853, %v1527
  %v1529 = vpop.f32.mrb[0].mxu0
  %v1530 = vadd.f32 %v849, %v1529
  %v1531 = vpop.f32.mrb[0].mxu0
  %v1532 = vadd.f32 %v853, %v1531
  %1533 = vmatprep.mubr.bf16.mxu0 %v767
  %1534 = vmatmul.mubr.bf16.gmra.mrb[0].mxu0 %v766
  %v1535 = vpop.f32.mrb[0].mxu0
  %v1536 = vadd.f32 %v849, %v1535
  %v1537 = vpop.f32.mrb[0].mxu0
  %v1538 = vadd.f32 %v853, %v1537
  %v1539 = vpop.f32.mrb[0].mxu0
  %v1540 = vadd.f32 %v849, %v1539
  %v1541 = vpop.f32.mrb[0].mxu0
  %v1542 = vadd.f32 %v853, %v1541
  %1543 = vmatprep.mubr.bf16.mxu0 %v769
  %1544 = vmatmul.mubr.bf16.gmra.mrb[0].mxu0 %v768
  %v1545 = vpop.f32.mrb[0].mxu0
  %v1546 = vadd.f32 %v849, %v1545
  %v1547 = vpop.f32.mrb[0].mxu0
  %v1548 = vadd.f32 %v853, %v1547
  %v1549 = vpop.f32.mrb[0].mxu0
  %v1550 = vadd.f32 %v849, %v1549
  %v1551 = vpop.f32.mrb[0].mxu0
  %v1552 = vadd.f32 %v853, %v1551
  %1553 = vmatprep.mubr.bf16.mxu0 %v771
  %1554 = vmatmul.mubr.bf16.gmra.mrb[0].mxu0 %v770
  %v1555 = vpop.f32.mrb[0].mxu0
  %v1556 = vadd.f32 %v849, %v1555
  %v1557 = vpop.f32.mrb[0].mxu0
  %v1558 = vadd.f32 %v853, %v1557
  %v1559 = vpop.f32.mrb[0].mxu0
  %v1560 = vadd.f32 %v849, %v1559
  %v1561 = vpop.f32.mrb[0].mxu0
  %v1562 = vadd.f32 %v853, %v1561
  %1563 = vdwg.mxu0
  %v1564 = vmax.f32 %v1213, 0.0
  %v1565 = vmax.f32 %v1215, 0.0
  %v1566 = vmax.f32 %v1406, 0.0
  %v1567 = vmax.f32 %v1408, 0.0
  %v1568 = vmax.f32 %v1217, 0.0
  %v1569 = vmax.f32 %v1219, 0.0
  %v1570 = vmax.f32 %v1410, 0.0
  %v1571 = vmax.f32 %v1412, 0.0
  %v1572 = vmax.f32 %v1223, 0.0
  %v1573 = vmax.f32 %v1225, 0.0
  %v1574 = vmax.f32 %v1416, 0.0
  %v1575 = vmax.f32 %v1418, 0.0
  %v1576 = vmax.f32 %v1227, 0.0
  %v1577 = vmax.f32 %v1229, 0.0
  %v1578 = vmax.f32 %v1420, 0.0
  %v1579 = vmax.f32 %v1422, 0.0
  %v1580 = vmax.f32 %v1233, 0.0
  %v1581 = vmax.f32 %v1235, 0.0
  %v1582 = vmax.f32 %v1426, 0.0
  %v1583 = vmax.f32 %v1428, 0.0
  %v1584 = vmax.f32 %v1237, 0.0
  %v1585 = vmax.f32 %v1239, 0.0
  %v1586 = vmax.f32 %v1430, 0.0
  %v1587 = vmax.f32 %v1432, 0.0
  %v1588 = vmax.f32 %v1243, 0.0
  %v1589 = vmax.f32 %v1245, 0.0
  %v1590 = vmax.f32 %v1436, 0.0
  %v1591 = vmax.f32 %v1438, 0.0
  %v1592 = vmax.f32 %v1247, 0.0
  %v1593 = vmax.f32 %v1249, 0.0
  %v1594 = vmax.f32 %v1440, 0.0
  %v1595 = vmax.f32 %v1442, 0.0
  %v1596 = vmax.f32 %v1253, 0.0
  %v1597 = vmax.f32 %v1255, 0.0
  %v1598 = vmax.f32 %v1446, 0.0
  %v1599 = vmax.f32 %v1448, 0.0
  %v1600 = vmax.f32 %v1257, 0.0
  %v1601 = vmax.f32 %v1259, 0.0
  %v1602 = vmax.f32 %v1450, 0.0
  %v1603 = vmax.f32 %v1452, 0.0
  %v1604 = vmax.f32 %v1263, 0.0
  %v1605 = vmax.f32 %v1265, 0.0
  %v1606 = vmax.f32 %v1456, 0.0
  %v1607 = vmax.f32 %v1458, 0.0
  %v1608 = vmax.f32 %v1267, 0.0
  %v1609 = vmax.f32 %v1269, 0.0
  %v1610 = vmax.f32 %v1460, 0.0
  %v1611 = vmax.f32 %v1462, 0.0
  %v1612 = vmax.f32 %v1273, 0.0
  %v1613 = vmax.f32 %v1275, 0.0
  %v1614 = vmax.f32 %v1466, 0.0
  %v1615 = vmax.f32 %v1468, 0.0
  %v1616 = vmax.f32 %v1277, 0.0
  %v1617 = vmax.f32 %v1279, 0.0
  %v1618 = vmax.f32 %v1470, 0.0
  %v1619 = vmax.f32 %v1472, 0.0
  %v1620 = vmax.f32 %v1283, 0.0
  %v1621 = vmax.f32 %v1285, 0.0
  %v1622 = vmax.f32 %v1476, 0.0
  %v1623 = vmax.f32 %v1478, 0.0
  %v1624 = vmax.f32 %v1287, 0.0
  %v1625 = vmax.f32 %v1289, 0.0
  %v1626 = vmax.f32 %v1480, 0.0
  %v1627 = vmax.f32 %v1482, 0.0
  %v1628 = vmax.f32 %v1293, 0.0
  %v1629 = vmax.f32 %v1295, 0.0
  %v1630 = vmax.f32 %v1486, 0.0
  %v1631 = vmax.f32 %v1488, 0.0
  %v1632 = vmax.f32 %v1297, 0.0
  %v1633 = vmax.f32 %v1299, 0.0
  %v1634 = vmax.f32 %v1490, 0.0
  %v1635 = vmax.f32 %v1492, 0.0
  %v1636 = vmax.f32 %v1303, 0.0
  %v1637 = vmax.f32 %v1305, 0.0
  %v1638 = vmax.f32 %v1496, 0.0
  %v1639 = vmax.f32 %v1498, 0.0
  %v1640 = vmax.f32 %v1307, 0.0
  %v1641 = vmax.f32 %v1309, 0.0
  %v1642 = vmax.f32 %v1500, 0.0
  %v1643 = vmax.f32 %v1502, 0.0
  %v1644 = vmax.f32 %v1313, 0.0
  %v1645 = vmax.f32 %v1315, 0.0
  %v1646 = vmax.f32 %v1506, 0.0
  %v1647 = vmax.f32 %v1508, 0.0
  %v1648 = vmax.f32 %v1317, 0.0
  %v1649 = vmax.f32 %v1319, 0.0
  %v1650 = vmax.f32 %v1510, 0.0
  %v1651 = vmax.f32 %v1512, 0.0
  %v1652 = vmax.f32 %v1323, 0.0
  %v1653 = vmax.f32 %v1325, 0.0
  %v1654 = vmax.f32 %v1516, 0.0
  %v1655 = vmax.f32 %v1518, 0.0
  %v1656 = vmax.f32 %v1327, 0.0
  %v1657 = vmax.f32 %v1329, 0.0
  %v1658 = vmax.f32 %v1520, 0.0
  %v1659 = vmax.f32 %v1522, 0.0
  %v1660 = vmax.f32 %v1333, 0.0
  %v1661 = vmax.f32 %v1335, 0.0
  %v1662 = vmax.f32 %v1526, 0.0
  %v1663 = vmax.f32 %v1528, 0.0
  %v1664 = vmax.f32 %v1337, 0.0
  %v1665 = vmax.f32 %v1339, 0.0
  %v1666 = vmax.f32 %v1530, 0.0
  %v1667 = vmax.f32 %v1532, 0.0
  %v1668 = vmax.f32 %v1343, 0.0
  %v1669 = vmax.f32 %v1345, 0.0
  %v1670 = vmax.f32 %v1536, 0.0
  %v1671 = vmax.f32 %v1538, 0.0
  %v1672 = vmax.f32 %v1347, 0.0
  %v1673 = vmax.f32 %v1349, 0.0
  %v1674 = vmax.f32 %v1540, 0.0
  %v1675 = vmax.f32 %v1542, 0.0
  %v1676 = vmax.f32 %v1353, 0.0
  %v1677 = vmax.f32 %v1355, 0.0
  %v1678 = vmax.f32 %v1546, 0.0
  %v1679 = vmax.f32 %v1548, 0.0
  %v1680 = vmax.f32 %v1357, 0.0
  %v1681 = vmax.f32 %v1359, 0.0
  %v1682 = vmax.f32 %v1550, 0.0
  %v1683 = vmax.f32 %v1552, 0.0
  %v1684 = vmax.f32 %v1363, 0.0
  %v1685 = vmax.f32 %v1365, 0.0
  %v1686 = vmax.f32 %v1556, 0.0
  %v1687 = vmax.f32 %v1558, 0.0
  %v1688 = vmax.f32 %v1367, 0.0
  %v1689 = vmax.f32 %v1369, 0.0
  %v1690 = vmax.f32 %v1560, 0.0
  %v1691 = vmax.f32 %v1562, 0.0
  %v1692 = vpack.c.bf16 %v1568, %v1564
  %v1693 = vpack.c.bf16 %v1569, %v1565
  %v1694 = vpack.c.bf16 %v1570, %v1566
  %v1695 = vpack.c.bf16 %v1571, %v1567
  %v1696 = vpack.c.bf16 %v1576, %v1572
  %v1697 = vpack.c.bf16 %v1577, %v1573
  %v1698 = vpack.c.bf16 %v1578, %v1574
  %v1699 = vpack.c.bf16 %v1579, %v1575
  %v1700 = vpack.c.bf16 %v1584, %v1580
  %v1701 = vpack.c.bf16 %v1585, %v1581
  %v1702 = vpack.c.bf16 %v1586, %v1582
  %v1703 = vpack.c.bf16 %v1587, %v1583
  %v1704 = vpack.c.bf16 %v1592, %v1588
  %v1705 = vpack.c.bf16 %v1593, %v1589
  %v1706 = vpack.c.bf16 %v1594, %v1590
  %v1707 = vpack.c.bf16 %v1595, %v1591
  %v1708 = vpack.c.bf16 %v1600, %v1596
  %v1709 = vpack.c.bf16 %v1601, %v1597
  %v1710 = vpack.c.bf16 %v1602, %v1598
  %v1711 = vpack.c.bf16 %v1603, %v1599
  %v1712 = vpack.c.bf16 %v1608, %v1604
  %v1713 = vpack.c.bf16 %v1609, %v1605
  %v1714 = vpack.c.bf16 %v1610, %v1606
  %v1715 = vpack.c.bf16 %v1611, %v1607
  %v1716 = vpack.c.bf16 %v1616, %v1612
  %v1717 = vpack.c.bf16 %v1617, %v1613
  %v1718 = vpack.c.bf16 %v1618, %v1614
  %v1719 = vpack.c.bf16 %v1619, %v1615
  %v1720 = vpack.c.bf16 %v1624, %v1620
  %v1721 = vpack.c.bf16 %v1625, %v1621
  %v1722 = vpack.c.bf16 %v1626, %v1622
  %v1723 = vpack.c.bf16 %v1627, %v1623
  %v1724 = vpack.c.bf16 %v1632, %v1628
  %v1725 = vpack.c.bf16 %v1633, %v1629
  %v1726 = vpack.c.bf16 %v1634, %v1630
  %v1727 = vpack.c.bf16 %v1635, %v1631
  %v1728 = vpack.c.bf16 %v1640, %v1636
  %v1729 = vpack.c.bf16 %v1641, %v1637
  %v1730 = vpack.c.bf16 %v1642, %v1638
  %v1731 = vpack.c.bf16 %v1643, %v1639
  %v1732 = vpack.c.bf16 %v1648, %v1644
  %v1733 = vpack.c.bf16 %v1649, %v1645
  %v1734 = vpack.c.bf16 %v1650, %v1646
  %v1735 = vpack.c.bf16 %v1651, %v1647
  %v1736 = vpack.c.bf16 %v1656, %v1652
  %v1737 = vpack.c.bf16 %v1657, %v1653
  %v1738 = vpack.c.bf16 %v1658, %v1654
  %v1739 = vpack.c.bf16 %v1659, %v1655
  %v1740 = vpack.c.bf16 %v1664, %v1660
  %v1741 = vpack.c.bf16 %v1665, %v1661
  %v1742 = vpack.c.bf16 %v1666, %v1662
  %v1743 = vpack.c.bf16 %v1667, %v1663
  %v1744 = vpack.c.bf16 %v1672, %v1668
  %v1745 = vpack.c.bf16 %v1673, %v1669
  %v1746 = vpack.c.bf16 %v1674, %v1670
  %v1747 = vpack.c.bf16 %v1675, %v1671
  %v1748 = vpack.c.bf16 %v1680, %v1676
  %v1749 = vpack.c.bf16 %v1681, %v1677
  %v1750 = vpack.c.bf16 %v1682, %v1678
  %v1751 = vpack.c.bf16 %v1683, %v1679
  %v1752 = vpack.c.bf16 %v1688, %v1684
  %v1753 = vpack.c.bf16 %v1689, %v1685
  %v1754 = vpack.c.bf16 %v1690, %v1686
  %v1755 = vpack.c.bf16 %v1691, %v1687
  %v1756 = vld [vmem:[%s7] sm:$0xff]
  %v1757 = vld [vmem:[%s7 + $0x8] sm:$0xff]
  %v1758 = vld [vmem:[%s7 + $0x10] sm:$0xff]
  %v1759 = vld [vmem:[%s7 + $0x18] sm:$0xff]
  %v1760 = vld [vmem:[%s7 + $0x20] sm:$0xff]
  %v1761 = vld [vmem:[%s7 + $0x28] sm:$0xff]
  %v1762 = vld [vmem:[%s7 + $0x30] sm:$0xff]
  %v1763 = vld [vmem:[%s7 + $0x38] sm:$0xff]
  %v1764 = vld [vmem:[%s7 + $0x40] sm:$0xff]
  %v1765 = vld [vmem:[%s7 + $0x48] sm:$0xff]
  %v1766 = vld [vmem:[%s7 + $0x50] sm:$0xff]
  %v1767 = vld [vmem:[%s7 + $0x58] sm:$0xff]
  %v1768 = vld [vmem:[%s7 + $0x60] sm:$0xff]
  %v1769 = vld [vmem:[%s7 + $0x68] sm:$0xff]
  %v1770 = vld [vmem:[%s7 + $0x70] sm:$0xff]
  %v1771 = vld [vmem:[%s7 + $0x78] sm:$0xff]
  %v1772 = vld [vmem:[%s7 + $0x80] sm:$0xff]
  %v1773 = vld [vmem:[%s7 + $0x88] sm:$0xff]
  %v1774 = vld [vmem:[%s7 + $0x90] sm:$0xff]
  %v1775 = vld [vmem:[%s7 + $0x98] sm:$0xff]
  %v1776 = vld [vmem:[%s7 + $0xa0] sm:$0xff]
  %v1777 = vld [vmem:[%s7 + $0xa8] sm:$0xff]
  %v1778 = vld [vmem:[%s7 + $0xb0] sm:$0xff]
  %v1779 = vld [vmem:[%s7 + $0xb8] sm:$0xff]
  %v1780 = vld [vmem:[%s7 + $0xc0] sm:$0xff]
  %v1781 = vld [vmem:[%s7 + $0xc8] sm:$0xff]
  %v1782 = vld [vmem:[%s7 + $0xd0] sm:$0xff]
  %v1783 = vld [vmem:[%s7 + $0xd8] sm:$0xff]
  %v1784 = vld [vmem:[%s7 + $0xe0] sm:$0xff]
  %v1785 = vld [vmem:[%s7 + $0xe8] sm:$0xff]
  %v1786 = vld [vmem:[%s7 + $0xf0] sm:$0xff]
  %v1787 = vld [vmem:[%s7 + $0xf8] sm:$0xff]
  %v1788 = vld [vmem:[%s7 + $0x100] sm:$0xff]
  %v1789 = vld [vmem:[%s7 + $0x108] sm:$0xff]
  %v1790 = vld [vmem:[%s7 + $0x110] sm:$0xff]
  %v1791 = vld [vmem:[%s7 + $0x118] sm:$0xff]
  %v1792 = vld [vmem:[%s7 + $0x120] sm:$0xff]
  %v1793 = vld [vmem:[%s7 + $0x128] sm:$0xff]
  %v1794 = vld [vmem:[%s7 + $0x130] sm:$0xff]
  %v1795 = vld [vmem:[%s7 + $0x138] sm:$0xff]
  %v1796 = vld [vmem:[%s7 + $0x140] sm:$0xff]
  %v1797 = vld [vmem:[%s7 + $0x148] sm:$0xff]
  %v1798 = vld [vmem:[%s7 + $0x150] sm:$0xff]
  %v1799 = vld [vmem:[%s7 + $0x158] sm:$0xff]
  %v1800 = vld [vmem:[%s7 + $0x160] sm:$0xff]
  %v1801 = vld [vmem:[%s7 + $0x168] sm:$0xff]
  %v1802 = vld [vmem:[%s7 + $0x170] sm:$0xff]
  %v1803 = vld [vmem:[%s7 + $0x178] sm:$0xff]
  %v1804 = vld [vmem:[%s7 + $0x180] sm:$0xff]
  %v1805 = vld [vmem:[%s7 + $0x188] sm:$0xff]
  %v1806 = vld [vmem:[%s7 + $0x190] sm:$0xff]
  %v1807 = vld [vmem:[%s7 + $0x198] sm:$0xff]
  %v1808 = vld [vmem:[%s7 + $0x1a0] sm:$0xff]
  %v1809 = vld [vmem:[%s7 + $0x1a8] sm:$0xff]
  %v1810 = vld [vmem:[%s7 + $0x1b0] sm:$0xff]
  %v1811 = vld [vmem:[%s7 + $0x1b8] sm:$0xff]
  %v1812 = vld [vmem:[%s7 + $0x1c0] sm:$0xff]
  %v1813 = vld [vmem:[%s7 + $0x1c8] sm:$0xff]
  %v1814 = vld [vmem:[%s7 + $0x1d0] sm:$0xff]
  %v1815 = vld [vmem:[%s7 + $0x1d8] sm:$0xff]
  %v1816 = vld [vmem:[%s7 + $0x1e0] sm:$0xff]
  %v1817 = vld [vmem:[%s7 + $0x1e8] sm:$0xff]
  %v1818 = vld [vmem:[%s7 + $0x1f0] sm:$0xff]
  %v1819 = vld [vmem:[%s7 + $0x1f8] sm:$0xff]
  %v1820 = vld [vmem:[%s8] sm:$0x3]
  %v1822 = vlaneseq
  %v1823 = vshrl.u32 %v1822, 7
  %v1824 = vsub.s32 0, %v1823
  %v1825 = vrot.slane %v1820, %v1824
  %v1826 = vlaneseq
  %v1827 = vshrl.u32 %v1826, 7
  %v1828 = vsub.s32 1, %v1827
  %v1829 = vrot.slane %v1820, %v1828
  %v1896 = vunpack.c.l.b16 %v1756
  %v1897 = vunpack.c.h.b16 %v1756
  %v1898 = vunpack.c.l.b16 %v1757
  %v1899 = vunpack.c.h.b16 %v1757
  %v1900 = vunpack.c.l.b16 %v1758
  %v1901 = vunpack.c.h.b16 %v1758
  %v1902 = vunpack.c.l.b16 %v1759
  %v1903 = vunpack.c.h.b16 %v1759
  %v1904 = vunpack.c.l.b16 %v1760
  %v1905 = vunpack.c.h.b16 %v1760
  %v1906 = vunpack.c.l.b16 %v1761
  %v1907 = vunpack.c.h.b16 %v1761
  %v1908 = vunpack.c.l.b16 %v1762
  %v1909 = vunpack.c.h.b16 %v1762
  %v1910 = vunpack.c.l.b16 %v1763
  %v1911 = vunpack.c.h.b16 %v1763
  %v1912 = vunpack.c.l.b16 %v1764
  %v1913 = vunpack.c.h.b16 %v1764
  %v1914 = vunpack.c.l.b16 %v1765
  %v1915 = vunpack.c.h.b16 %v1765
  %v1916 = vunpack.c.l.b16 %v1766
  %v1917 = vunpack.c.h.b16 %v1766
  %v1918 = vunpack.c.l.b16 %v1767
  %v1919 = vunpack.c.h.b16 %v1767
  %v1920 = vunpack.c.l.b16 %v1768
  %v1921 = vunpack.c.h.b16 %v1768
  %v1922 = vunpack.c.l.b16 %v1769
  %v1923 = vunpack.c.h.b16 %v1769
  %v1924 = vunpack.c.l.b16 %v1770
  %v1925 = vunpack.c.h.b16 %v1770
  %v1926 = vunpack.c.l.b16 %v1771
  %v1927 = vunpack.c.h.b16 %v1771
  %v1928 = vunpack.c.l.b16 %v1772
  %v1929 = vunpack.c.h.b16 %v1772
  %v1930 = vunpack.c.l.b16 %v1773
  %v1931 = vunpack.c.h.b16 %v1773
  %v1932 = vunpack.c.l.b16 %v1774
  %v1933 = vunpack.c.h.b16 %v1774
  %v1934 = vunpack.c.l.b16 %v1775
  %v1935 = vunpack.c.h.b16 %v1775
  %v1936 = vunpack.c.l.b16 %v1776
  %v1937 = vunpack.c.h.b16 %v1776
  %v1938 = vunpack.c.l.b16 %v1777
  %v1939 = vunpack.c.h.b16 %v1777
  %v1940 = vunpack.c.l.b16 %v1778
  %v1941 = vunpack.c.h.b16 %v1778
  %v1942 = vunpack.c.l.b16 %v1779
  %v1943 = vunpack.c.h.b16 %v1779
  %v1944 = vunpack.c.l.b16 %v1780
  %v1945 = vunpack.c.h.b16 %v1780
  %v1946 = vunpack.c.l.b16 %v1781
  %v1947 = vunpack.c.h.b16 %v1781
  %v1948 = vunpack.c.l.b16 %v1782
  %v1949 = vunpack.c.h.b16 %v1782
  %v1950 = vunpack.c.l.b16 %v1783
  %v1951 = vunpack.c.h.b16 %v1783
  %v1952 = vunpack.c.l.b16 %v1784
  %v1953 = vunpack.c.h.b16 %v1784
  %v1954 = vunpack.c.l.b16 %v1785
  %v1955 = vunpack.c.h.b16 %v1785
  %v1956 = vunpack.c.l.b16 %v1786
  %v1957 = vunpack.c.h.b16 %v1786
  %v1958 = vunpack.c.l.b16 %v1787
  %v1959 = vunpack.c.h.b16 %v1787
  %v1960 = vunpack.c.l.b16 %v1788
  %v1961 = vunpack.c.h.b16 %v1788
  %v1962 = vunpack.c.l.b16 %v1789
  %v1963 = vunpack.c.h.b16 %v1789
  %v1964 = vunpack.c.l.b16 %v1790
  %v1965 = vunpack.c.h.b16 %v1790
  %v1966 = vunpack.c.l.b16 %v1791
  %v1967 = vunpack.c.h.b16 %v1791
  %v1968 = vunpack.c.l.b16 %v1792
  %v1969 = vunpack.c.h.b16 %v1792
  %v1970 = vunpack.c.l.b16 %v1793
  %v1971 = vunpack.c.h.b16 %v1793
  %v1972 = vunpack.c.l.b16 %v1794
  %v1973 = vunpack.c.h.b16 %v1794
  %v1974 = vunpack.c.l.b16 %v1795
  %v1975 = vunpack.c.h.b16 %v1795
  %v1976 = vunpack.c.l.b16 %v1796
  %v1977 = vunpack.c.h.b16 %v1796
  %v1978 = vunpack.c.l.b16 %v1797
  %v1979 = vunpack.c.h.b16 %v1797
  %v1980 = vunpack.c.l.b16 %v1798
  %v1981 = vunpack.c.h.b16 %v1798
  %v1982 = vunpack.c.l.b16 %v1799
  %v1983 = vunpack.c.h.b16 %v1799
  %v1984 = vunpack.c.l.b16 %v1800
  %v1985 = vunpack.c.h.b16 %v1800
  %v1986 = vunpack.c.l.b16 %v1801
  %v1987 = vunpack.c.h.b16 %v1801
  %v1988 = vunpack.c.l.b16 %v1802
  %v1989 = vunpack.c.h.b16 %v1802
  %v1990 = vunpack.c.l.b16 %v1803
  %v1991 = vunpack.c.h.b16 %v1803
  %v1992 = vunpack.c.l.b16 %v1804
  %v1993 = vunpack.c.h.b16 %v1804
  %v1994 = vunpack.c.l.b16 %v1805
  %v1995 = vunpack.c.h.b16 %v1805
  %v1996 = vunpack.c.l.b16 %v1806
  %v1997 = vunpack.c.h.b16 %v1806
  %v1998 = vunpack.c.l.b16 %v1807
  %v1999 = vunpack.c.h.b16 %v1807
  %v2000 = vunpack.c.l.b16 %v1808
  %v2001 = vunpack.c.h.b16 %v1808
  %v2002 = vunpack.c.l.b16 %v1809
  %v2003 = vunpack.c.h.b16 %v1809
  %v2004 = vunpack.c.l.b16 %v1810
  %v2005 = vunpack.c.h.b16 %v1810
  %v2006 = vunpack.c.l.b16 %v1811
  %v2007 = vunpack.c.h.b16 %v1811
  %v2008 = vunpack.c.l.b16 %v1812
  %v2009 = vunpack.c.h.b16 %v1812
  %v2010 = vunpack.c.l.b16 %v1813
  %v2011 = vunpack.c.h.b16 %v1813
  %v2012 = vunpack.c.l.b16 %v1814
  %v2013 = vunpack.c.h.b16 %v1814
  %v2014 = vunpack.c.l.b16 %v1815
  %v2015 = vunpack.c.h.b16 %v1815
  %v2016 = vunpack.c.l.b16 %v1816
  %v2017 = vunpack.c.h.b16 %v1816
  %v2018 = vunpack.c.l.b16 %v1817
  %v2019 = vunpack.c.h.b16 %v1817
  %v2020 = vunpack.c.l.b16 %v1818
  %v2021 = vunpack.c.h.b16 %v1818
  %v2022 = vunpack.c.l.b16 %v1819
  %v2023 = vunpack.c.h.b16 %v1819
  %v2024 = vpack.c.b16 %v1898, %v1896
  %v2025 = vpack.c.b16 %v1899, %v1897
  %v2026 = vpack.c.b16 %v1902, %v1900
  %v2027 = vpack.c.b16 %v1903, %v1901
  %v2028 = vpack.c.b16 %v1906, %v1904
  %v2029 = vpack.c.b16 %v1907, %v1905
  %v2030 = vpack.c.b16 %v1910, %v1908
  %v2031 = vpack.c.b16 %v1911, %v1909
  %v2032 = vpack.c.b16 %v1914, %v1912
  %v2033 = vpack.c.b16 %v1915, %v1913
  %v2034 = vpack.c.b16 %v1918, %v1916
  %v2035 = vpack.c.b16 %v1919, %v1917
  %v2036 = vpack.c.b16 %v1922, %v1920
  %v2037 = vpack.c.b16 %v1923, %v1921
  %v2038 = vpack.c.b16 %v1926, %v1924
  %v2039 = vpack.c.b16 %v1927, %v1925
  %v2040 = vpack.c.b16 %v1930, %v1928
  %v2041 = vpack.c.b16 %v1931, %v1929
  %v2042 = vpack.c.b16 %v1934, %v1932
  %v2043 = vpack.c.b16 %v1935, %v1933
  %v2044 = vpack.c.b16 %v1938, %v1936
  %v2045 = vpack.c.b16 %v1939, %v1937
  %v2046 = vpack.c.b16 %v1942, %v1940
  %v2047 = vpack.c.b16 %v1943, %v1941
  %v2048 = vpack.c.b16 %v1946, %v1944
  %v2049 = vpack.c.b16 %v1947, %v1945
  %v2050 = vpack.c.b16 %v1950, %v1948
  %v2051 = vpack.c.b16 %v1951, %v1949
  %v2052 = vpack.c.b16 %v1954, %v1952
  %v2053 = vpack.c.b16 %v1955, %v1953
  %v2054 = vpack.c.b16 %v1958, %v1956
  %v2055 = vpack.c.b16 %v1959, %v1957
  %v2056 = vpack.c.b16 %v1962, %v1960
  %v2057 = vpack.c.b16 %v1963, %v1961
  %v2058 = vpack.c.b16 %v1966, %v1964
  %v2059 = vpack.c.b16 %v1967, %v1965
  %v2060 = vpack.c.b16 %v1970, %v1968
  %v2061 = vpack.c.b16 %v1971, %v1969
  %v2062 = vpack.c.b16 %v1974, %v1972
  %v2063 = vpack.c.b16 %v1975, %v1973
  %v2064 = vpack.c.b16 %v1978, %v1976
  %v2065 = vpack.c.b16 %v1979, %v1977
  %v2066 = vpack.c.b16 %v1982, %v1980
  %v2067 = vpack.c.b16 %v1983, %v1981
  %v2068 = vpack.c.b16 %v1986, %v1984
  %v2069 = vpack.c.b16 %v1987, %v1985
  %v2070 = vpack.c.b16 %v1990, %v1988
  %v2071 = vpack.c.b16 %v1991, %v1989
  %v2072 = vpack.c.b16 %v1994, %v1992
  %v2073 = vpack.c.b16 %v1995, %v1993
  %v2074 = vpack.c.b16 %v1998, %v1996
  %v2075 = vpack.c.b16 %v1999, %v1997
  %v2076 = vpack.c.b16 %v2002, %v2000
  %v2077 = vpack.c.b16 %v2003, %v2001
  %v2078 = vpack.c.b16 %v2006, %v2004
  %v2079 = vpack.c.b16 %v2007, %v2005
  %v2080 = vpack.c.b16 %v2010, %v2008
  %v2081 = vpack.c.b16 %v2011, %v2009
  %v2082 = vpack.c.b16 %v2014, %v2012
  %v2083 = vpack.c.b16 %v2015, %v2013
  %v2084 = vpack.c.b16 %v2018, %v2016
  %v2085 = vpack.c.b16 %v2019, %v2017
  %v2086 = vpack.c.b16 %v2022, %v2020
  %v2087 = vpack.c.b16 %v2023, %v2021
  %2152 = vmatprep.subr.bf16.mxu0 %v2025
  %2153 = vmatpush1.bf16.msra.mxu0 %v2024
  %2154 = vmatprep.subr.bf16.mxu0 %v2027
  %2155 = vmatpush1.bf16.msra.mxu0 %v2026
  %2156 = vmatprep.subr.bf16.mxu0 %v2029
  %2157 = vmatpush1.bf16.msra.mxu0 %v2028
  %2158 = vmatprep.subr.bf16.mxu0 %v2031
  %2159 = vmatpush1.bf16.msra.mxu0 %v2030
  %2160 = vmatprep.subr.bf16.mxu0 %v2033
  %2161 = vmatpush1.bf16.msra.mxu0 %v2032
  %2162 = vmatprep.subr.bf16.mxu0 %v2035
  %2163 = vmatpush1.bf16.msra.mxu0 %v2034
  %2164 = vmatprep.subr.bf16.mxu0 %v2037
  %2165 = vmatpush1.bf16.msra.mxu0 %v2036
  %2166 = vmatprep.subr.bf16.mxu0 %v2039
  %2167 = vmatpush1.bf16.msra.mxu0 %v2038
  %2168 = vmatprep.subr.bf16.mxu0 %v2041
  %2169 = vmatpush1.bf16.msra.mxu0 %v2040
  %2170 = vmatprep.subr.bf16.mxu0 %v2043
  %2171 = vmatpush1.bf16.msra.mxu0 %v2042
  %2172 = vmatprep.subr.bf16.mxu0 %v2045
  %2173 = vmatpush1.bf16.msra.mxu0 %v2044
  %2174 = vmatprep.subr.bf16.mxu0 %v2047
  %2175 = vmatpush1.bf16.msra.mxu0 %v2046
  %2176 = vmatprep.subr.bf16.mxu0 %v2049
  %2177 = vmatpush1.bf16.msra.mxu0 %v2048
  %2178 = vmatprep.subr.bf16.mxu0 %v2051
  %2179 = vmatpush1.bf16.msra.mxu0 %v2050
  %2180 = vmatprep.subr.bf16.mxu0 %v2053
  %2181 = vmatpush1.bf16.msra.mxu0 %v2052
  %2182 = vmatprep.subr.bf16.mxu0 %v2055
  %2183 = vmatpush1.bf16.msra.mxu0 %v2054
  %2184 = vmatprep.mubr.bf16.mxu0 %v1693
  %2185 = vmatmul.mubr.bf16.gmra.mrb[0].mxu0 %v1692
  %v2186 = vpop.f32.mrb[0].mxu0
  %v2187 = vadd.f32 %v1825, %v2186
  %v2188 = vpop.f32.mrb[0].mxu0
  %v2189 = vadd.f32 %v1829, %v2188
  %v2190 = vpop.f32.mrb[0].mxu0
  %v2191 = vadd.f32 %v1825, %v2190
  %v2192 = vpop.f32.mrb[0].mxu0
  %v2193 = vadd.f32 %v1829, %v2192
  %2194 = vmatprep.mubr.bf16.mxu0 %v1697
  %2195 = vmatmul.mubr.bf16.gmra.mrb[0].mxu0 %v1696
  %v2196 = vpop.f32.mrb[0].mxu0
  %v2197 = vadd.f32 %v1825, %v2196
  %v2198 = vpop.f32.mrb[0].mxu0
  %v2199 = vadd.f32 %v1829, %v2198
  %v2200 = vpop.f32.mrb[0].mxu0
  %v2201 = vadd.f32 %v1825, %v2200
  %v2202 = vpop.f32.mrb[0].mxu0
  %v2203 = vadd.f32 %v1829, %v2202
  %2204 = vmatprep.mubr.bf16.mxu0 %v1701
  %2205 = vmatmul.mubr.bf16.gmra.mrb[0].mxu0 %v1700
  %v2206 = vpop.f32.mrb[0].mxu0
  %v2207 = vadd.f32 %v1825, %v2206
  %v2208 = vpop.f32.mrb[0].mxu0
  %v2209 = vadd.f32 %v1829, %v2208
  %v2210 = vpop.f32.mrb[0].mxu0
  %v2211 = vadd.f32 %v1825, %v2210
  %v2212 = vpop.f32.mrb[0].mxu0
  %v2213 = vadd.f32 %v1829, %v2212
  %2214 = vmatprep.mubr.bf16.mxu0 %v1705
  %2215 = vmatmul.mubr.bf16.gmra.mrb[0].mxu0 %v1704
  %v2216 = vpop.f32.mrb[0].mxu0
  %v2217 = vadd.f32 %v1825, %v2216
  %v2218 = vpop.f32.mrb[0].mxu0
  %v2219 = vadd.f32 %v1829, %v2218
  %v2220 = vpop.f32.mrb[0].mxu0
  %v2221 = vadd.f32 %v1825, %v2220
  %v2222 = vpop.f32.mrb[0].mxu0
  %v2223 = vadd.f32 %v1829, %v2222
  %2224 = vmatprep.mubr.bf16.mxu0 %v1709
  %2225 = vmatmul.mubr.bf16.gmra.mrb[0].mxu0 %v1708
  %v2226 = vpop.f32.mrb[0].mxu0
  %v2227 = vadd.f32 %v1825, %v2226
  %v2228 = vpop.f32.mrb[0].mxu0
  %v2229 = vadd.f32 %v1829, %v2228
  %v2230 = vpop.f32.mrb[0].mxu0
  %v2231 = vadd.f32 %v1825, %v2230
  %v2232 = vpop.f32.mrb[0].mxu0
  %v2233 = vadd.f32 %v1829, %v2232
  %2234 = vmatprep.mubr.bf16.mxu0 %v1713
  %2235 = vmatmul.mubr.bf16.gmra.mrb[0].mxu0 %v1712
  %v2236 = vpop.f32.mrb[0].mxu0
  %v2237 = vadd.f32 %v1825, %v2236
  %v2238 = vpop.f32.mrb[0].mxu0
  %v2239 = vadd.f32 %v1829, %v2238
  %v2240 = vpop.f32.mrb[0].mxu0
  %v2241 = vadd.f32 %v1825, %v2240
  %v2242 = vpop.f32.mrb[0].mxu0
  %v2243 = vadd.f32 %v1829, %v2242
  %2244 = vmatprep.mubr.bf16.mxu0 %v1717
  %2245 = vmatmul.mubr.bf16.gmra.mrb[0].mxu0 %v1716
  %v2246 = vpop.f32.mrb[0].mxu0
  %v2247 = vadd.f32 %v1825, %v2246
  %v2248 = vpop.f32.mrb[0].mxu0
  %v2249 = vadd.f32 %v1829, %v2248
  %v2250 = vpop.f32.mrb[0].mxu0
  %v2251 = vadd.f32 %v1825, %v2250
  %v2252 = vpop.f32.mrb[0].mxu0
  %v2253 = vadd.f32 %v1829, %v2252
  %2254 = vmatprep.mubr.bf16.mxu0 %v1721
  %2255 = vmatmul.mubr.bf16.gmra.mrb[0].mxu0 %v1720
  %v2256 = vpop.f32.mrb[0].mxu0
  %v2257 = vadd.f32 %v1825, %v2256
  %v2258 = vpop.f32.mrb[0].mxu0
  %v2259 = vadd.f32 %v1829, %v2258
  %v2260 = vpop.f32.mrb[0].mxu0
  %v2261 = vadd.f32 %v1825, %v2260
  %v2262 = vpop.f32.mrb[0].mxu0
  %v2263 = vadd.f32 %v1829, %v2262
  %2264 = vmatprep.mubr.bf16.mxu0 %v1725
  %2265 = vmatmul.mubr.bf16.gmra.mrb[0].mxu0 %v1724
  %v2266 = vpop.f32.mrb[0].mxu0
  %v2267 = vadd.f32 %v1825, %v2266
  %v2268 = vpop.f32.mrb[0].mxu0
  %v2269 = vadd.f32 %v1829, %v2268
  %v2270 = vpop.f32.mrb[0].mxu0
  %v2271 = vadd.f32 %v1825, %v2270
  %v2272 = vpop.f32.mrb[0].mxu0
  %v2273 = vadd.f32 %v1829, %v2272
  %2274 = vmatprep.mubr.bf16.mxu0 %v1729
  %2275 = vmatmul.mubr.bf16.gmra.mrb[0].mxu0 %v1728
  %v2276 = vpop.f32.mrb[0].mxu0
  %v2277 = vadd.f32 %v1825, %v2276
  %v2278 = vpop.f32.mrb[0].mxu0
  %v2279 = vadd.f32 %v1829, %v2278
  %v2280 = vpop.f32.mrb[0].mxu0
  %v2281 = vadd.f32 %v1825, %v2280
  %v2282 = vpop.f32.mrb[0].mxu0
  %v2283 = vadd.f32 %v1829, %v2282
  %2284 = vmatprep.mubr.bf16.mxu0 %v1733
  %2285 = vmatmul.mubr.bf16.gmra.mrb[0].mxu0 %v1732
  %v2286 = vpop.f32.mrb[0].mxu0
  %v2287 = vadd.f32 %v1825, %v2286
  %v2288 = vpop.f32.mrb[0].mxu0
  %v2289 = vadd.f32 %v1829, %v2288
  %v2290 = vpop.f32.mrb[0].mxu0
  %v2291 = vadd.f32 %v1825, %v2290
  %v2292 = vpop.f32.mrb[0].mxu0
  %v2293 = vadd.f32 %v1829, %v2292
  %2294 = vmatprep.mubr.bf16.mxu0 %v1737
  %2295 = vmatmul.mubr.bf16.gmra.mrb[0].mxu0 %v1736
  %v2296 = vpop.f32.mrb[0].mxu0
  %v2297 = vadd.f32 %v1825, %v2296
  %v2298 = vpop.f32.mrb[0].mxu0
  %v2299 = vadd.f32 %v1829, %v2298
  %v2300 = vpop.f32.mrb[0].mxu0
  %v2301 = vadd.f32 %v1825, %v2300
  %v2302 = vpop.f32.mrb[0].mxu0
  %v2303 = vadd.f32 %v1829, %v2302
  %2304 = vmatprep.mubr.bf16.mxu0 %v1741
  %2305 = vmatmul.mubr.bf16.gmra.mrb[0].mxu0 %v1740
  %v2306 = vpop.f32.mrb[0].mxu0
  %v2307 = vadd.f32 %v1825, %v2306
  %v2308 = vpop.f32.mrb[0].mxu0
  %v2309 = vadd.f32 %v1829, %v2308
  %v2310 = vpop.f32.mrb[0].mxu0
  %v2311 = vadd.f32 %v1825, %v2310
  %v2312 = vpop.f32.mrb[0].mxu0
  %v2313 = vadd.f32 %v1829, %v2312
  %2314 = vmatprep.mubr.bf16.mxu0 %v1745
  %2315 = vmatmul.mubr.bf16.gmra.mrb[0].mxu0 %v1744
  %v2316 = vpop.f32.mrb[0].mxu0
  %v2317 = vadd.f32 %v1825, %v2316
  %v2318 = vpop.f32.mrb[0].mxu0
  %v2319 = vadd.f32 %v1829, %v2318
  %v2320 = vpop.f32.mrb[0].mxu0
  %v2321 = vadd.f32 %v1825, %v2320
  %v2322 = vpop.f32.mrb[0].mxu0
  %v2323 = vadd.f32 %v1829, %v2322
  %2324 = vmatprep.mubr.bf16.mxu0 %v1749
  %2325 = vmatmul.mubr.bf16.gmra.mrb[0].mxu0 %v1748
  %v2326 = vpop.f32.mrb[0].mxu0
  %v2327 = vadd.f32 %v1825, %v2326
  %v2328 = vpop.f32.mrb[0].mxu0
  %v2329 = vadd.f32 %v1829, %v2328
  %v2330 = vpop.f32.mrb[0].mxu0
  %v2331 = vadd.f32 %v1825, %v2330
  %v2332 = vpop.f32.mrb[0].mxu0
  %v2333 = vadd.f32 %v1829, %v2332
  %2334 = vmatprep.mubr.bf16.mxu0 %v1753
  %2335 = vmatmul.mubr.bf16.gmra.mrb[0].mxu0 %v1752
  %v2336 = vpop.f32.mrb[0].mxu0
  %v2337 = vadd.f32 %v1825, %v2336
  %v2338 = vpop.f32.mrb[0].mxu0
  %v2339 = vadd.f32 %v1829, %v2338
  %v2340 = vpop.f32.mrb[0].mxu0
  %v2341 = vadd.f32 %v1825, %v2340
  %v2342 = vpop.f32.mrb[0].mxu0
  %v2343 = vadd.f32 %v1829, %v2342
  %2344 = vdwg.mxu0
  %2345 = vmatprep.subr.bf16.mxu0 %v2057
  %2346 = vmatpush1.bf16.msra.mxu0 %v2056
  %2347 = vmatprep.subr.bf16.mxu0 %v2059
  %2348 = vmatpush1.bf16.msra.mxu0 %v2058
  %2349 = vmatprep.subr.bf16.mxu0 %v2061
  %2350 = vmatpush1.bf16.msra.mxu0 %v2060
  %2351 = vmatprep.subr.bf16.mxu0 %v2063
  %2352 = vmatpush1.bf16.msra.mxu0 %v2062
  %2353 = vmatprep.subr.bf16.mxu0 %v2065
  %2354 = vmatpush1.bf16.msra.mxu0 %v2064
  %2355 = vmatprep.subr.bf16.mxu0 %v2067
  %2356 = vmatpush1.bf16.msra.mxu0 %v2066
  %2357 = vmatprep.subr.bf16.mxu0 %v2069
  %2358 = vmatpush1.bf16.msra.mxu0 %v2068
  %2359 = vmatprep.subr.bf16.mxu0 %v2071
  %2360 = vmatpush1.bf16.msra.mxu0 %v2070
  %2361 = vmatprep.subr.bf16.mxu0 %v2073
  %2362 = vmatpush1.bf16.msra.mxu0 %v2072
  %2363 = vmatprep.subr.bf16.mxu0 %v2075
  %2364 = vmatpush1.bf16.msra.mxu0 %v2074
  %2365 = vmatprep.subr.bf16.mxu0 %v2077
  %2366 = vmatpush1.bf16.msra.mxu0 %v2076
  %2367 = vmatprep.subr.bf16.mxu0 %v2079
  %2368 = vmatpush1.bf16.msra.mxu0 %v2078
  %2369 = vmatprep.subr.bf16.mxu0 %v2081
  %2370 = vmatpush1.bf16.msra.mxu0 %v2080
  %2371 = vmatprep.subr.bf16.mxu0 %v2083
  %2372 = vmatpush1.bf16.msra.mxu0 %v2082
  %2373 = vmatprep.subr.bf16.mxu0 %v2085
  %2374 = vmatpush1.bf16.msra.mxu0 %v2084
  %2375 = vmatprep.subr.bf16.mxu0 %v2087
  %2376 = vmatpush1.bf16.msra.mxu0 %v2086
  %2377 = vmatprep.mubr.bf16.mxu0 %v1695
  %2378 = vmatmul.mubr.bf16.gmra.mrb[0].mxu0 %v1694
  %v2379 = vpop.f32.mrb[0].mxu0
  %v2380 = vadd.f32 %v2187, %v2379
  %v2381 = vpop.f32.mrb[0].mxu0
  %v2382 = vadd.f32 %v2189, %v2381
  %v2383 = vpop.f32.mrb[0].mxu0
  %v2384 = vadd.f32 %v2191, %v2383
  %v2385 = vpop.f32.mrb[0].mxu0
  %v2386 = vadd.f32 %v2193, %v2385
  %2387 = vmatprep.mubr.bf16.mxu0 %v1699
  %2388 = vmatmul.mubr.bf16.gmra.mrb[0].mxu0 %v1698
  %v2389 = vpop.f32.mrb[0].mxu0
  %v2390 = vadd.f32 %v2197, %v2389
  %v2391 = vpop.f32.mrb[0].mxu0
  %v2392 = vadd.f32 %v2199, %v2391
  %v2393 = vpop.f32.mrb[0].mxu0
  %v2394 = vadd.f32 %v2201, %v2393
  %v2395 = vpop.f32.mrb[0].mxu0
  %v2396 = vadd.f32 %v2203, %v2395
  %2397 = vmatprep.mubr.bf16.mxu0 %v1703
  %2398 = vmatmul.mubr.bf16.gmra.mrb[0].mxu0 %v1702
  %v2399 = vpop.f32.mrb[0].mxu0
  %v2400 = vadd.f32 %v2207, %v2399
  %v2401 = vpop.f32.mrb[0].mxu0
  %v2402 = vadd.f32 %v2209, %v2401
  %v2403 = vpop.f32.mrb[0].mxu0
  %v2404 = vadd.f32 %v2211, %v2403
  %v2405 = vpop.f32.mrb[0].mxu0
  %v2406 = vadd.f32 %v2213, %v2405
  %2407 = vmatprep.mubr.bf16.mxu0 %v1707
  %2408 = vmatmul.mubr.bf16.gmra.mrb[0].mxu0 %v1706
  %v2409 = vpop.f32.mrb[0].mxu0
  %v2410 = vadd.f32 %v2217, %v2409
  %v2411 = vpop.f32.mrb[0].mxu0
  %v2412 = vadd.f32 %v2219, %v2411
  %v2413 = vpop.f32.mrb[0].mxu0
  %v2414 = vadd.f32 %v2221, %v2413
  %v2415 = vpop.f32.mrb[0].mxu0
  %v2416 = vadd.f32 %v2223, %v2415
  %2417 = vmatprep.mubr.bf16.mxu0 %v1711
  %2418 = vmatmul.mubr.bf16.gmra.mrb[0].mxu0 %v1710
  %v2419 = vpop.f32.mrb[0].mxu0
  %v2420 = vadd.f32 %v2227, %v2419
  %v2421 = vpop.f32.mrb[0].mxu0
  %v2422 = vadd.f32 %v2229, %v2421
  %v2423 = vpop.f32.mrb[0].mxu0
  %v2424 = vadd.f32 %v2231, %v2423
  %v2425 = vpop.f32.mrb[0].mxu0
  %v2426 = vadd.f32 %v2233, %v2425
  %2427 = vmatprep.mubr.bf16.mxu0 %v1715
  %2428 = vmatmul.mubr.bf16.gmra.mrb[0].mxu0 %v1714
  %v2429 = vpop.f32.mrb[0].mxu0
  %v2430 = vadd.f32 %v2237, %v2429
  %v2431 = vpop.f32.mrb[0].mxu0
  %v2432 = vadd.f32 %v2239, %v2431
  %v2433 = vpop.f32.mrb[0].mxu0
  %v2434 = vadd.f32 %v2241, %v2433
  %v2435 = vpop.f32.mrb[0].mxu0
  %v2436 = vadd.f32 %v2243, %v2435
  %2437 = vmatprep.mubr.bf16.mxu0 %v1719
  %2438 = vmatmul.mubr.bf16.gmra.mrb[0].mxu0 %v1718
  %v2439 = vpop.f32.mrb[0].mxu0
  %v2440 = vadd.f32 %v2247, %v2439
  %v2441 = vpop.f32.mrb[0].mxu0
  %v2442 = vadd.f32 %v2249, %v2441
  %v2443 = vpop.f32.mrb[0].mxu0
  %v2444 = vadd.f32 %v2251, %v2443
  %v2445 = vpop.f32.mrb[0].mxu0
  %v2446 = vadd.f32 %v2253, %v2445
  %2447 = vmatprep.mubr.bf16.mxu0 %v1723
  %2448 = vmatmul.mubr.bf16.gmra.mrb[0].mxu0 %v1722
  %v2449 = vpop.f32.mrb[0].mxu0
  %v2450 = vadd.f32 %v2257, %v2449
  %v2451 = vpop.f32.mrb[0].mxu0
  %v2452 = vadd.f32 %v2259, %v2451
  %v2453 = vpop.f32.mrb[0].mxu0
  %v2454 = vadd.f32 %v2261, %v2453
  %v2455 = vpop.f32.mrb[0].mxu0
  %v2456 = vadd.f32 %v2263, %v2455
  %2457 = vmatprep.mubr.bf16.mxu0 %v1727
  %2458 = vmatmul.mubr.bf16.gmra.mrb[0].mxu0 %v1726
  %v2459 = vpop.f32.mrb[0].mxu0
  %v2460 = vadd.f32 %v2267, %v2459
  %v2461 = vpop.f32.mrb[0].mxu0
  %v2462 = vadd.f32 %v2269, %v2461
  %v2463 = vpop.f32.mrb[0].mxu0
  %v2464 = vadd.f32 %v2271, %v2463
  %v2465 = vpop.f32.mrb[0].mxu0
  %v2466 = vadd.f32 %v2273, %v2465
  %2467 = vmatprep.mubr.bf16.mxu0 %v1731
  %2468 = vmatmul.mubr.bf16.gmra.mrb[0].mxu0 %v1730
  %v2469 = vpop.f32.mrb[0].mxu0
  %v2470 = vadd.f32 %v2277, %v2469
  %v2471 = vpop.f32.mrb[0].mxu0
  %v2472 = vadd.f32 %v2279, %v2471
  %v2473 = vpop.f32.mrb[0].mxu0
  %v2474 = vadd.f32 %v2281, %v2473
  %v2475 = vpop.f32.mrb[0].mxu0
  %v2476 = vadd.f32 %v2283, %v2475
  %2477 = vmatprep.mubr.bf16.mxu0 %v1735
  %2478 = vmatmul.mubr.bf16.gmra.mrb[0].mxu0 %v1734
  %v2479 = vpop.f32.mrb[0].mxu0
  %v2480 = vadd.f32 %v2287, %v2479
  %v2481 = vpop.f32.mrb[0].mxu0
  %v2482 = vadd.f32 %v2289, %v2481
  %v2483 = vpop.f32.mrb[0].mxu0
  %v2484 = vadd.f32 %v2291, %v2483
  %v2485 = vpop.f32.mrb[0].mxu0
  %v2486 = vadd.f32 %v2293, %v2485
  %2487 = vmatprep.mubr.bf16.mxu0 %v1739
  %2488 = vmatmul.mubr.bf16.gmra.mrb[0].mxu0 %v1738
  %v2489 = vpop.f32.mrb[0].mxu0
  %v2490 = vadd.f32 %v2297, %v2489
  %v2491 = vpop.f32.mrb[0].mxu0
  %v2492 = vadd.f32 %v2299, %v2491
  %v2493 = vpop.f32.mrb[0].mxu0
  %v2494 = vadd.f32 %v2301, %v2493
  %v2495 = vpop.f32.mrb[0].mxu0
  %v2496 = vadd.f32 %v2303, %v2495
  %2497 = vmatprep.mubr.bf16.mxu0 %v1743
  %2498 = vmatmul.mubr.bf16.gmra.mrb[0].mxu0 %v1742
  %v2499 = vpop.f32.mrb[0].mxu0
  %v2500 = vadd.f32 %v2307, %v2499
  %v2501 = vpop.f32.mrb[0].mxu0
  %v2502 = vadd.f32 %v2309, %v2501
  %v2503 = vpop.f32.mrb[0].mxu0
  %v2504 = vadd.f32 %v2311, %v2503
  %v2505 = vpop.f32.mrb[0].mxu0
  %v2506 = vadd.f32 %v2313, %v2505
  %2507 = vmatprep.mubr.bf16.mxu0 %v1747
  %2508 = vmatmul.mubr.bf16.gmra.mrb[0].mxu0 %v1746
  %v2509 = vpop.f32.mrb[0].mxu0
  %v2510 = vadd.f32 %v2317, %v2509
  %v2511 = vpop.f32.mrb[0].mxu0
  %v2512 = vadd.f32 %v2319, %v2511
  %v2513 = vpop.f32.mrb[0].mxu0
  %v2514 = vadd.f32 %v2321, %v2513
  %v2515 = vpop.f32.mrb[0].mxu0
  %v2516 = vadd.f32 %v2323, %v2515
  %2517 = vmatprep.mubr.bf16.mxu0 %v1751
  %2518 = vmatmul.mubr.bf16.gmra.mrb[0].mxu0 %v1750
  %v2519 = vpop.f32.mrb[0].mxu0
  %v2520 = vadd.f32 %v2327, %v2519
  %v2521 = vpop.f32.mrb[0].mxu0
  %v2522 = vadd.f32 %v2329, %v2521
  %v2523 = vpop.f32.mrb[0].mxu0
  %v2524 = vadd.f32 %v2331, %v2523
  %v2525 = vpop.f32.mrb[0].mxu0
  %v2526 = vadd.f32 %v2333, %v2525
  %2527 = vmatprep.mubr.bf16.mxu0 %v1755
  %2528 = vmatmul.mubr.bf16.gmra.mrb[0].mxu0 %v1754
  %v2529 = vpop.f32.mrb[0].mxu0
  %v2530 = vadd.f32 %v2337, %v2529
  %v2531 = vpop.f32.mrb[0].mxu0
  %v2532 = vadd.f32 %v2339, %v2531
  %v2533 = vpop.f32.mrb[0].mxu0
  %v2534 = vadd.f32 %v2341, %v2533
  %v2535 = vpop.f32.mrb[0].mxu0
  %v2536 = vadd.f32 %v2343, %v2535
  %2537 = vdwg.mxu0
  %v2538 = vmax.f32 %v2380, 0.0
  %v2539 = vmax.f32 %v2382, 0.0
  %v2540 = vmax.f32 %v2384, 0.0
  %v2541 = vmax.f32 %v2386, 0.0
  %v2542 = vmax.f32 %v2390, 0.0
  %v2543 = vmax.f32 %v2392, 0.0
  %v2544 = vmax.f32 %v2394, 0.0
  %v2545 = vmax.f32 %v2396, 0.0
  %v2546 = vmax.f32 %v2400, 0.0
  %v2547 = vmax.f32 %v2402, 0.0
  %v2548 = vmax.f32 %v2404, 0.0
  %v2549 = vmax.f32 %v2406, 0.0
  %v2550 = vmax.f32 %v2410, 0.0
  %v2551 = vmax.f32 %v2412, 0.0
  %v2552 = vmax.f32 %v2414, 0.0
  %v2553 = vmax.f32 %v2416, 0.0
  %v2554 = vmax.f32 %v2420, 0.0
  %v2555 = vmax.f32 %v2422, 0.0
  %v2556 = vmax.f32 %v2424, 0.0
  %v2557 = vmax.f32 %v2426, 0.0
  %v2558 = vmax.f32 %v2430, 0.0
  %v2559 = vmax.f32 %v2432, 0.0
  %v2560 = vmax.f32 %v2434, 0.0
  %v2561 = vmax.f32 %v2436, 0.0
  %v2562 = vmax.f32 %v2440, 0.0
  %v2563 = vmax.f32 %v2442, 0.0
  %v2564 = vmax.f32 %v2444, 0.0
  %v2565 = vmax.f32 %v2446, 0.0
  %v2566 = vmax.f32 %v2450, 0.0
  %v2567 = vmax.f32 %v2452, 0.0
  %v2568 = vmax.f32 %v2454, 0.0
  %v2569 = vmax.f32 %v2456, 0.0
  %v2570 = vmax.f32 %v2460, 0.0
  %v2571 = vmax.f32 %v2462, 0.0
  %v2572 = vmax.f32 %v2464, 0.0
  %v2573 = vmax.f32 %v2466, 0.0
  %v2574 = vmax.f32 %v2470, 0.0
  %v2575 = vmax.f32 %v2472, 0.0
  %v2576 = vmax.f32 %v2474, 0.0
  %v2577 = vmax.f32 %v2476, 0.0
  %v2578 = vmax.f32 %v2480, 0.0
  %v2579 = vmax.f32 %v2482, 0.0
  %v2580 = vmax.f32 %v2484, 0.0
  %v2581 = vmax.f32 %v2486, 0.0
  %v2582 = vmax.f32 %v2490, 0.0
  %v2583 = vmax.f32 %v2492, 0.0
  %v2584 = vmax.f32 %v2494, 0.0
  %v2585 = vmax.f32 %v2496, 0.0
  %v2586 = vmax.f32 %v2500, 0.0
  %v2587 = vmax.f32 %v2502, 0.0
  %v2588 = vmax.f32 %v2504, 0.0
  %v2589 = vmax.f32 %v2506, 0.0
  %v2590 = vmax.f32 %v2510, 0.0
  %v2591 = vmax.f32 %v2512, 0.0
  %v2592 = vmax.f32 %v2514, 0.0
  %v2593 = vmax.f32 %v2516, 0.0
  %v2594 = vmax.f32 %v2520, 0.0
  %v2595 = vmax.f32 %v2522, 0.0
  %v2596 = vmax.f32 %v2524, 0.0
  %v2597 = vmax.f32 %v2526, 0.0
  %v2598 = vmax.f32 %v2530, 0.0
  %v2599 = vmax.f32 %v2532, 0.0
  %v2600 = vmax.f32 %v2534, 0.0
  %v2601 = vmax.f32 %v2536, 0.0
  %v2602 = vpack.c.bf16 %v2540, %v2538
  %v2603 = vpack.c.bf16 %v2541, %v2539
  %v2604 = vpack.c.bf16 %v2544, %v2542
  %v2605 = vpack.c.bf16 %v2545, %v2543
  %v2606 = vpack.c.bf16 %v2548, %v2546
  %v2607 = vpack.c.bf16 %v2549, %v2547
  %v2608 = vpack.c.bf16 %v2552, %v2550
  %v2609 = vpack.c.bf16 %v2553, %v2551
  %v2610 = vpack.c.bf16 %v2556, %v2554
  %v2611 = vpack.c.bf16 %v2557, %v2555
  %v2612 = vpack.c.bf16 %v2560, %v2558
  %v2613 = vpack.c.bf16 %v2561, %v2559
  %v2614 = vpack.c.bf16 %v2564, %v2562
  %v2615 = vpack.c.bf16 %v2565, %v2563
  %v2616 = vpack.c.bf16 %v2568, %v2566
  %v2617 = vpack.c.bf16 %v2569, %v2567
  %v2618 = vpack.c.bf16 %v2572, %v2570
  %v2619 = vpack.c.bf16 %v2573, %v2571
  %v2620 = vpack.c.bf16 %v2576, %v2574
  %v2621 = vpack.c.bf16 %v2577, %v2575
  %v2622 = vpack.c.bf16 %v2580, %v2578
  %v2623 = vpack.c.bf16 %v2581, %v2579
  %v2624 = vpack.c.bf16 %v2584, %v2582
  %v2625 = vpack.c.bf16 %v2585, %v2583
  %v2626 = vpack.c.bf16 %v2588, %v2586
  %v2627 = vpack.c.bf16 %v2589, %v2587
  %v2628 = vpack.c.bf16 %v2592, %v2590
  %v2629 = vpack.c.bf16 %v2593, %v2591
  %v2630 = vpack.c.bf16 %v2596, %v2594
  %v2631 = vpack.c.bf16 %v2597, %v2595
  %v2632 = vpack.c.bf16 %v2600, %v2598
  %v2633 = vpack.c.bf16 %v2601, %v2599
  %v2634 = vld [vmem:[%s9] sm:$0xf]
  %v2635 = vld [vmem:[%s9 + $0x4] sm:$0xf]
  %v2636 = vld [vmem:[%s9 + $0x8] sm:$0xf]
  %v2637 = vld [vmem:[%s9 + $0xc] sm:$0xf]
  %v2638 = vld [vmem:[%s9 + $0x10] sm:$0xf]
  %v2639 = vld [vmem:[%s9 + $0x14] sm:$0xf]
  %v2640 = vld [vmem:[%s9 + $0x18] sm:$0xf]
  %v2641 = vld [vmem:[%s9 + $0x1c] sm:$0xf]
  %v2642 = vld [vmem:[%s9 + $0x20] sm:$0xf]
  %v2643 = vld [vmem:[%s9 + $0x24] sm:$0xf]
  %v2644 = vld [vmem:[%s9 + $0x28] sm:$0xf]
  %v2645 = vld [vmem:[%s9 + $0x2c] sm:$0xf]
  %v2646 = vld [vmem:[%s9 + $0x30] sm:$0xf]
  %v2647 = vld [vmem:[%s9 + $0x34] sm:$0xf]
  %v2648 = vld [vmem:[%s9 + $0x38] sm:$0xf]
  %v2649 = vld [vmem:[%s9 + $0x3c] sm:$0xf]
  %v2650 = vld [vmem:[%s9 + $0x40] sm:$0xf]
  %v2651 = vld [vmem:[%s9 + $0x44] sm:$0xf]
  %v2652 = vld [vmem:[%s9 + $0x48] sm:$0xf]
  %v2653 = vld [vmem:[%s9 + $0x4c] sm:$0xf]
  %v2654 = vld [vmem:[%s9 + $0x50] sm:$0xf]
  %v2655 = vld [vmem:[%s9 + $0x54] sm:$0xf]
  %v2656 = vld [vmem:[%s9 + $0x58] sm:$0xf]
  %v2657 = vld [vmem:[%s9 + $0x5c] sm:$0xf]
  %v2658 = vld [vmem:[%s9 + $0x60] sm:$0xf]
  %v2659 = vld [vmem:[%s9 + $0x64] sm:$0xf]
  %v2660 = vld [vmem:[%s9 + $0x68] sm:$0xf]
  %v2661 = vld [vmem:[%s9 + $0x6c] sm:$0xf]
  %v2662 = vld [vmem:[%s9 + $0x70] sm:$0xf]
  %v2663 = vld [vmem:[%s9 + $0x74] sm:$0xf]
  %v2664 = vld [vmem:[%s9 + $0x78] sm:$0xf]
  %v2665 = vld [vmem:[%s9 + $0x7c] sm:$0xf]
  %v2666 = vld [vmem:[%s10] sm:$0x1]
  %v2668 = vlaneseq
  %v2669 = vshrl.u32 %v2668, 7
  %v2670 = vsub.s32 0, %v2669
  %v2671 = vrot.slane %v2666, %v2670
  %v2705 = vunpack.c.l.b16 %v2634
  %v2706 = vunpack.c.l.b16 %v2635
  %v2707 = vunpack.c.l.b16 %v2636
  %v2708 = vunpack.c.l.b16 %v2637
  %v2709 = vunpack.c.l.b16 %v2638
  %v2710 = vunpack.c.l.b16 %v2639
  %v2711 = vunpack.c.l.b16 %v2640
  %v2712 = vunpack.c.l.b16 %v2641
  %v2713 = vunpack.c.l.b16 %v2642
  %v2714 = vunpack.c.l.b16 %v2643
  %v2715 = vunpack.c.l.b16 %v2644
  %v2716 = vunpack.c.l.b16 %v2645
  %v2717 = vunpack.c.l.b16 %v2646
  %v2718 = vunpack.c.l.b16 %v2647
  %v2719 = vunpack.c.l.b16 %v2648
  %v2720 = vunpack.c.l.b16 %v2649
  %v2721 = vunpack.c.l.b16 %v2650
  %v2722 = vunpack.c.l.b16 %v2651
  %v2723 = vunpack.c.l.b16 %v2652
  %v2724 = vunpack.c.l.b16 %v2653
  %v2725 = vunpack.c.l.b16 %v2654
  %v2726 = vunpack.c.l.b16 %v2655
  %v2727 = vunpack.c.l.b16 %v2656
  %v2728 = vunpack.c.l.b16 %v2657
  %v2729 = vunpack.c.l.b16 %v2658
  %v2730 = vunpack.c.l.b16 %v2659
  %v2731 = vunpack.c.l.b16 %v2660
  %v2732 = vunpack.c.l.b16 %v2661
  %v2733 = vunpack.c.l.b16 %v2662
  %v2734 = vunpack.c.l.b16 %v2663
  %v2735 = vunpack.c.l.b16 %v2664
  %v2736 = vunpack.c.l.b16 %v2665
  %v2737 = vpack.c.b16 %v2706, %v2705
  %v2738 = vpack.c.b16 %v2708, %v2707
  %v2739 = vpack.c.b16 %v2710, %v2709
  %v2740 = vpack.c.b16 %v2712, %v2711
  %v2741 = vpack.c.b16 %v2714, %v2713
  %v2742 = vpack.c.b16 %v2716, %v2715
  %v2743 = vpack.c.b16 %v2718, %v2717
  %v2744 = vpack.c.b16 %v2720, %v2719
  %v2745 = vpack.c.b16 %v2722, %v2721
  %v2746 = vpack.c.b16 %v2724, %v2723
  %v2747 = vpack.c.b16 %v2726, %v2725
  %v2748 = vpack.c.b16 %v2728, %v2727
  %v2749 = vpack.c.b16 %v2730, %v2729
  %v2750 = vpack.c.b16 %v2732, %v2731
  %v2751 = vpack.c.b16 %v2734, %v2733
  %v2752 = vpack.c.b16 %v2736, %v2735
  %2769 = vmatprep.subr.bf16.mxu0 0
  %2770 = vmatpush1.bf16.msra.mxu0 %v2737
  %2771 = vmatprep.subr.bf16.mxu0 0
  %2772 = vmatpush1.bf16.msra.mxu0 %v2738
  %2773 = vmatprep.subr.bf16.mxu0 0
  %2774 = vmatpush1.bf16.msra.mxu0 %v2739
  %2775 = vmatprep.subr.bf16.mxu0 0
  %2776 = vmatpush1.bf16.msra.mxu0 %v2740
  %2777 = vmatprep.subr.bf16.mxu0 0
  %2778 = vmatpush1.bf16.msra.mxu0 %v2741
  %2779 = vmatprep.subr.bf16.mxu0 0
  %2780 = vmatpush1.bf16.msra.mxu0 %v2742
  %2781 = vmatprep.subr.bf16.mxu0 0
  %2782 = vmatpush1.bf16.msra.mxu0 %v2743
  %2783 = vmatprep.subr.bf16.mxu0 0
  %2784 = vmatpush1.bf16.msra.mxu0 %v2744
  %2785 = vmatprep.subr.bf16.mxu0 0
  %2786 = vmatpush1.bf16.msra.mxu0 %v2745
  %2787 = vmatprep.subr.bf16.mxu0 0
  %2788 = vmatpush1.bf16.msra.mxu0 %v2746
  %2789 = vmatprep.subr.bf16.mxu0 0
  %2790 = vmatpush1.bf16.msra.mxu0 %v2747
  %2791 = vmatprep.subr.bf16.mxu0 0
  %2792 = vmatpush1.bf16.msra.mxu0 %v2748
  %2793 = vmatprep.subr.bf16.mxu0 0
  %2794 = vmatpush1.bf16.msra.mxu0 %v2749
  %2795 = vmatprep.subr.bf16.mxu0 0
  %2796 = vmatpush1.bf16.msra.mxu0 %v2750
  %2797 = vmatprep.subr.bf16.mxu0 0
  %2798 = vmatpush1.bf16.msra.mxu0 %v2751
  %2799 = vmatprep.subr.bf16.mxu0 0
  %2800 = vmatpush1.bf16.msra.mxu0 %v2752
  %2801 = vmatprep.mubr.bf16.mxu0 %v2603
  %2802 = vmatmul.mubr.bf16.gmra.mrb[0].mxu0 %v2602
  %v2803 = vpop.f32.mrb[0].mxu0
  %v2804 = vadd.f32 %v2671, %v2803
  %v2805 = vpop.f32.mrb[0].mxu0
  %v2806 = vpop.f32.mrb[0].mxu0
  %v2807 = vadd.f32 %v2671, %v2806
  %v2808 = vpop.f32.mrb[0].mxu0
  %2809 = vmatprep.mubr.bf16.mxu0 %v2605
  %2810 = vmatmul.mubr.bf16.gmra.mrb[0].mxu0 %v2604
  %v2811 = vpop.f32.mrb[0].mxu0
  %v2812 = vadd.f32 %v2671, %v2811
  %v2813 = vpop.f32.mrb[0].mxu0
  %v2814 = vpop.f32.mrb[0].mxu0
  %v2815 = vadd.f32 %v2671, %v2814
  %v2816 = vpop.f32.mrb[0].mxu0
  %2817 = vmatprep.mubr.bf16.mxu0 %v2607
  %2818 = vmatmul.mubr.bf16.gmra.mrb[0].mxu0 %v2606
  %v2819 = vpop.f32.mrb[0].mxu0
  %v2820 = vadd.f32 %v2671, %v2819
  %v2821 = vpop.f32.mrb[0].mxu0
  %v2822 = vpop.f32.mrb[0].mxu0
  %v2823 = vadd.f32 %v2671, %v2822
  %v2824 = vpop.f32.mrb[0].mxu0
  %2825 = vmatprep.mubr.bf16.mxu0 %v2609
  %2826 = vmatmul.mubr.bf16.gmra.mrb[0].mxu0 %v2608
  %v2827 = vpop.f32.mrb[0].mxu0
  %v2828 = vadd.f32 %v2671, %v2827
  %v2829 = vpop.f32.mrb[0].mxu0
  %v2830 = vpop.f32.mrb[0].mxu0
  %v2831 = vadd.f32 %v2671, %v2830
  %v2832 = vpop.f32.mrb[0].mxu0
  %2833 = vmatprep.mubr.bf16.mxu0 %v2611
  %2834 = vmatmul.mubr.bf16.gmra.mrb[0].mxu0 %v2610
  %v2835 = vpop.f32.mrb[0].mxu0
  %v2836 = vadd.f32 %v2671, %v2835
  %v2837 = vpop.f32.mrb[0].mxu0
  %v2838 = vpop.f32.mrb[0].mxu0
  %v2839 = vadd.f32 %v2671, %v2838
  %v2840 = vpop.f32.mrb[0].mxu0
  %2841 = vmatprep.mubr.bf16.mxu0 %v2613
  %2842 = vmatmul.mubr.bf16.gmra.mrb[0].mxu0 %v2612
  %v2843 = vpop.f32.mrb[0].mxu0
  %v2844 = vadd.f32 %v2671, %v2843
  %v2845 = vpop.f32.mrb[0].mxu0
  %v2846 = vpop.f32.mrb[0].mxu0
  %v2847 = vadd.f32 %v2671, %v2846
  %v2848 = vpop.f32.mrb[0].mxu0
  %2849 = vmatprep.mubr.bf16.mxu0 %v2615
  %2850 = vmatmul.mubr.bf16.gmra.mrb[0].mxu0 %v2614
  %v2851 = vpop.f32.mrb[0].mxu0
  %v2852 = vadd.f32 %v2671, %v2851
  %v2853 = vpop.f32.mrb[0].mxu0
  %v2854 = vpop.f32.mrb[0].mxu0
  %v2855 = vadd.f32 %v2671, %v2854
  %v2856 = vpop.f32.mrb[0].mxu0
  %2857 = vmatprep.mubr.bf16.mxu0 %v2617
  %2858 = vmatmul.mubr.bf16.gmra.mrb[0].mxu0 %v2616
  %v2859 = vpop.f32.mrb[0].mxu0
  %v2860 = vadd.f32 %v2671, %v2859
  %v2861 = vpop.f32.mrb[0].mxu0
  %v2862 = vpop.f32.mrb[0].mxu0
  %v2863 = vadd.f32 %v2671, %v2862
  %v2864 = vpop.f32.mrb[0].mxu0
  %2865 = vmatprep.mubr.bf16.mxu0 %v2619
  %2866 = vmatmul.mubr.bf16.gmra.mrb[0].mxu0 %v2618
  %v2867 = vpop.f32.mrb[0].mxu0
  %v2868 = vadd.f32 %v2671, %v2867
  %v2869 = vpop.f32.mrb[0].mxu0
  %v2870 = vpop.f32.mrb[0].mxu0
  %v2871 = vadd.f32 %v2671, %v2870
  %v2872 = vpop.f32.mrb[0].mxu0
  %2873 = vmatprep.mubr.bf16.mxu0 %v2621
  %2874 = vmatmul.mubr.bf16.gmra.mrb[0].mxu0 %v2620
  %v2875 = vpop.f32.mrb[0].mxu0
  %v2876 = vadd.f32 %v2671, %v2875
  %v2877 = vpop.f32.mrb[0].mxu0
  %v2878 = vpop.f32.mrb[0].mxu0
  %v2879 = vadd.f32 %v2671, %v2878
  %v2880 = vpop.f32.mrb[0].mxu0
  %2881 = vmatprep.mubr.bf16.mxu0 %v2623
  %2882 = vmatmul.mubr.bf16.gmra.mrb[0].mxu0 %v2622
  %v2883 = vpop.f32.mrb[0].mxu0
  %v2884 = vadd.f32 %v2671, %v2883
  %v2885 = vpop.f32.mrb[0].mxu0
  %v2886 = vpop.f32.mrb[0].mxu0
  %v2887 = vadd.f32 %v2671, %v2886
  %v2888 = vpop.f32.mrb[0].mxu0
  %2889 = vmatprep.mubr.bf16.mxu0 %v2625
  %2890 = vmatmul.mubr.bf16.gmra.mrb[0].mxu0 %v2624
  %v2891 = vpop.f32.mrb[0].mxu0
  %v2892 = vadd.f32 %v2671, %v2891
  %v2893 = vpop.f32.mrb[0].mxu0
  %v2894 = vpop.f32.mrb[0].mxu0
  %v2895 = vadd.f32 %v2671, %v2894
  %v2896 = vpop.f32.mrb[0].mxu0
  %2897 = vmatprep.mubr.bf16.mxu0 %v2627
  %2898 = vmatmul.mubr.bf16.gmra.mrb[0].mxu0 %v2626
  %v2899 = vpop.f32.mrb[0].mxu0
  %v2900 = vadd.f32 %v2671, %v2899
  %v2901 = vpop.f32.mrb[0].mxu0
  %v2902 = vpop.f32.mrb[0].mxu0
  %v2903 = vadd.f32 %v2671, %v2902
  %v2904 = vpop.f32.mrb[0].mxu0
  %2905 = vmatprep.mubr.bf16.mxu0 %v2629
  %2906 = vmatmul.mubr.bf16.gmra.mrb[0].mxu0 %v2628
  %v2907 = vpop.f32.mrb[0].mxu0
  %v2908 = vadd.f32 %v2671, %v2907
  %v2909 = vpop.f32.mrb[0].mxu0
  %v2910 = vpop.f32.mrb[0].mxu0
  %v2911 = vadd.f32 %v2671, %v2910
  %v2912 = vpop.f32.mrb[0].mxu0
  %2913 = vmatprep.mubr.bf16.mxu0 %v2631
  %2914 = vmatmul.mubr.bf16.gmra.mrb[0].mxu0 %v2630
  %v2915 = vpop.f32.mrb[0].mxu0
  %v2916 = vadd.f32 %v2671, %v2915
  %v2917 = vpop.f32.mrb[0].mxu0
  %v2918 = vpop.f32.mrb[0].mxu0
  %v2919 = vadd.f32 %v2671, %v2918
  %v2920 = vpop.f32.mrb[0].mxu0
  %2921 = vmatprep.mubr.bf16.mxu0 %v2633
  %2922 = vmatmul.mubr.bf16.gmra.mrb[0].mxu0 %v2632
  %v2923 = vpop.f32.mrb[0].mxu0
  %v2924 = vadd.f32 %v2671, %v2923
  %v2925 = vpop.f32.mrb[0].mxu0
  %v2926 = vpop.f32.mrb[0].mxu0
  %v2927 = vadd.f32 %v2671, %v2926
  %v2928 = vpop.f32.mrb[0].mxu0
  %2929 = vdwg.mxu0
  %v2930 = vmax.f32 %v2804, 0.0
  %v2931 = vmax.f32 %v2807, 0.0
  %v2932 = vmax.f32 %v2812, 0.0
  %v2933 = vmax.f32 %v2815, 0.0
  %v2934 = vmax.f32 %v2820, 0.0
  %v2935 = vmax.f32 %v2823, 0.0
  %v2936 = vmax.f32 %v2828, 0.0
  %v2937 = vmax.f32 %v2831, 0.0
  %v2938 = vmax.f32 %v2836, 0.0
  %v2939 = vmax.f32 %v2839, 0.0
  %v2940 = vmax.f32 %v2844, 0.0
  %v2941 = vmax.f32 %v2847, 0.0
  %v2942 = vmax.f32 %v2852, 0.0
  %v2943 = vmax.f32 %v2855, 0.0
  %v2944 = vmax.f32 %v2860, 0.0
  %v2945 = vmax.f32 %v2863, 0.0
  %v2946 = vmax.f32 %v2868, 0.0
  %v2947 = vmax.f32 %v2871, 0.0
  %v2948 = vmax.f32 %v2876, 0.0
  %v2949 = vmax.f32 %v2879, 0.0
  %v2950 = vmax.f32 %v2884, 0.0
  %v2951 = vmax.f32 %v2887, 0.0
  %v2952 = vmax.f32 %v2892, 0.0
  %v2953 = vmax.f32 %v2895, 0.0
  %v2954 = vmax.f32 %v2900, 0.0
  %v2955 = vmax.f32 %v2903, 0.0
  %v2956 = vmax.f32 %v2908, 0.0
  %v2957 = vmax.f32 %v2911, 0.0
  %v2958 = vmax.f32 %v2916, 0.0
  %v2959 = vmax.f32 %v2919, 0.0
  %v2960 = vmax.f32 %v2924, 0.0
  %v2961 = vmax.f32 %v2927, 0.0
  %v2962 = vld [vmem:[%s11] sm:$0x1]
  %v2964 = vlaneseq
  %v2965 = vshrl.u32 %v2964, 7
  %v2966 = vsub.s32 0, %v2965
  %v2967 = vrot.slane %v2962, %v2966
  %v2969 = vmul.f32 %v2930, %v2967
  %v2970 = vmul.f32 %v2931, %v2967
  %v2971 = vmul.f32 %v2932, %v2967
  %v2972 = vmul.f32 %v2933, %v2967
  %v2973 = vmul.f32 %v2934, %v2967
  %v2974 = vmul.f32 %v2935, %v2967
  %v2975 = vmul.f32 %v2936, %v2967
  %v2976 = vmul.f32 %v2937, %v2967
  %v2977 = vmul.f32 %v2938, %v2967
  %v2978 = vmul.f32 %v2939, %v2967
  %v2979 = vmul.f32 %v2940, %v2967
  %v2980 = vmul.f32 %v2941, %v2967
  %v2981 = vmul.f32 %v2942, %v2967
  %v2982 = vmul.f32 %v2943, %v2967
  %v2983 = vmul.f32 %v2944, %v2967
  %v2984 = vmul.f32 %v2945, %v2967
  %v2985 = vmul.f32 %v2946, %v2967
  %v2986 = vmul.f32 %v2947, %v2967
  %v2987 = vmul.f32 %v2948, %v2967
  %v2988 = vmul.f32 %v2949, %v2967
  %v2989 = vmul.f32 %v2950, %v2967
  %v2990 = vmul.f32 %v2951, %v2967
  %v2991 = vmul.f32 %v2952, %v2967
  %v2992 = vmul.f32 %v2953, %v2967
  %v2993 = vmul.f32 %v2954, %v2967
  %v2994 = vmul.f32 %v2955, %v2967
  %v2995 = vmul.f32 %v2956, %v2967
  %v2996 = vmul.f32 %v2957, %v2967
  %v2997 = vmul.f32 %v2958, %v2967
  %v2998 = vmul.f32 %v2959, %v2967
  %v2999 = vmul.f32 %v2960, %v2967
  %v3000 = vmul.f32 %v2961, %v2967
  %vm3001 = vcmask 523264
  %v3002 = vsel %vm3001, %v2969, 0.0
  %3003 = vadd.xlane.f32.xlu0 %v3002
  %v3004 = vpop.xlane.xlu0 %3003
  %v3005 = vsel %vm3001, %v2970, 0.0
  %3006 = vadd.xlane.f32.xlu0 %v3005
  %v3007 = vpop.xlane.xlu0 %3006
  %v3008 = vsel %vm3001, %v2971, 0.0
  %3009 = vadd.xlane.f32.xlu0 %v3008
  %v3010 = vpop.xlane.xlu0 %3009
  %v3011 = vsel %vm3001, %v2972, 0.0
  %3012 = vadd.xlane.f32.xlu0 %v3011
  %v3013 = vpop.xlane.xlu0 %3012
  %v3014 = vsel %vm3001, %v2973, 0.0
  %3015 = vadd.xlane.f32.xlu0 %v3014
  %v3016 = vpop.xlane.xlu0 %3015
  %v3017 = vsel %vm3001, %v2974, 0.0
  %3018 = vadd.xlane.f32.xlu0 %v3017
  %v3019 = vpop.xlane.xlu0 %3018
  %v3020 = vsel %vm3001, %v2975, 0.0
  %3021 = vadd.xlane.f32.xlu0 %v3020
  %v3022 = vpop.xlane.xlu0 %3021
  %v3023 = vsel %vm3001, %v2976, 0.0
  %3024 = vadd.xlane.f32.xlu0 %v3023
  %v3025 = vpop.xlane.xlu0 %3024
  %v3026 = vsel %vm3001, %v2977, 0.0
  %3027 = vadd.xlane.f32.xlu0 %v3026
  %v3028 = vpop.xlane.xlu0 %3027
  %v3029 = vsel %vm3001, %v2978, 0.0
  %3030 = vadd.xlane.f32.xlu0 %v3029
  %v3031 = vpop.xlane.xlu0 %3030
  %v3032 = vsel %vm3001, %v2979, 0.0
  %3033 = vadd.xlane.f32.xlu0 %v3032
  %v3034 = vpop.xlane.xlu0 %3033
  %v3035 = vsel %vm3001, %v2980, 0.0
  %3036 = vadd.xlane.f32.xlu0 %v3035
  %v3037 = vpop.xlane.xlu0 %3036
  %v3038 = vsel %vm3001, %v2981, 0.0
  %3039 = vadd.xlane.f32.xlu0 %v3038
  %v3040 = vpop.xlane.xlu0 %3039
  %v3041 = vsel %vm3001, %v2982, 0.0
  %3042 = vadd.xlane.f32.xlu0 %v3041
  %v3043 = vpop.xlane.xlu0 %3042
  %v3044 = vsel %vm3001, %v2983, 0.0
  %3045 = vadd.xlane.f32.xlu0 %v3044
  %v3046 = vpop.xlane.xlu0 %3045
  %v3047 = vsel %vm3001, %v2984, 0.0
  %3048 = vadd.xlane.f32.xlu0 %v3047
  %v3049 = vpop.xlane.xlu0 %3048
  %v3050 = vsel %vm3001, %v2985, 0.0
  %3051 = vadd.xlane.f32.xlu0 %v3050
  %v3052 = vpop.xlane.xlu0 %3051
  %v3053 = vsel %vm3001, %v2986, 0.0
  %3054 = vadd.xlane.f32.xlu0 %v3053
  %v3055 = vpop.xlane.xlu0 %3054
  %v3056 = vsel %vm3001, %v2987, 0.0
  %3057 = vadd.xlane.f32.xlu0 %v3056
  %v3058 = vpop.xlane.xlu0 %3057
  %v3059 = vsel %vm3001, %v2988, 0.0
  %3060 = vadd.xlane.f32.xlu0 %v3059
  %v3061 = vpop.xlane.xlu0 %3060
  %v3062 = vsel %vm3001, %v2989, 0.0
  %3063 = vadd.xlane.f32.xlu0 %v3062
  %v3064 = vpop.xlane.xlu0 %3063
  %v3065 = vsel %vm3001, %v2990, 0.0
  %3066 = vadd.xlane.f32.xlu0 %v3065
  %v3067 = vpop.xlane.xlu0 %3066
  %v3068 = vsel %vm3001, %v2991, 0.0
  %3069 = vadd.xlane.f32.xlu0 %v3068
  %v3070 = vpop.xlane.xlu0 %3069
  %v3071 = vsel %vm3001, %v2992, 0.0
  %3072 = vadd.xlane.f32.xlu0 %v3071
  %v3073 = vpop.xlane.xlu0 %3072
  %v3074 = vsel %vm3001, %v2993, 0.0
  %3075 = vadd.xlane.f32.xlu0 %v3074
  %v3076 = vpop.xlane.xlu0 %3075
  %v3077 = vsel %vm3001, %v2994, 0.0
  %3078 = vadd.xlane.f32.xlu0 %v3077
  %v3079 = vpop.xlane.xlu0 %3078
  %v3080 = vsel %vm3001, %v2995, 0.0
  %3081 = vadd.xlane.f32.xlu0 %v3080
  %v3082 = vpop.xlane.xlu0 %3081
  %v3083 = vsel %vm3001, %v2996, 0.0
  %3084 = vadd.xlane.f32.xlu0 %v3083
  %v3085 = vpop.xlane.xlu0 %3084
  %v3086 = vsel %vm3001, %v2997, 0.0
  %3087 = vadd.xlane.f32.xlu0 %v3086
  %v3088 = vpop.xlane.xlu0 %3087
  %v3089 = vsel %vm3001, %v2998, 0.0
  %3090 = vadd.xlane.f32.xlu0 %v3089
  %v3091 = vpop.xlane.xlu0 %3090
  %v3092 = vsel %vm3001, %v2999, 0.0
  %3093 = vadd.xlane.f32.xlu0 %v3092
  %v3094 = vpop.xlane.xlu0 %3093
  %v3095 = vsel %vm3001, %v3000, 0.0
  %3096 = vadd.xlane.f32.xlu0 %v3095
  %v3097 = vpop.xlane.xlu0 %3096
  %v3098 = vld [vmem:[#allocation2] sm:$0x1]
  %v3100 = vlaneseq
  %v3101 = vshrl.u32 %v3100, 7
  %v3102 = vsub.s32 0, %v3101
  %v3103 = vrot.slane %v3098, %v3102
  %v3105 = vadd.f32 %v3004, %v3103
  %v3106 = vadd.f32 %v3007, %v3103
  %v3107 = vadd.f32 %v3010, %v3103
  %v3108 = vadd.f32 %v3013, %v3103
  %v3109 = vadd.f32 %v3016, %v3103
  %v3110 = vadd.f32 %v3019, %v3103
  %v3111 = vadd.f32 %v3022, %v3103
  %v3112 = vadd.f32 %v3025, %v3103
  %v3113 = vadd.f32 %v3028, %v3103
  %v3114 = vadd.f32 %v3031, %v3103
  %v3115 = vadd.f32 %v3034, %v3103
  %v3116 = vadd.f32 %v3037, %v3103
  %v3117 = vadd.f32 %v3040, %v3103
  %v3118 = vadd.f32 %v3043, %v3103
  %v3119 = vadd.f32 %v3046, %v3103
  %v3120 = vadd.f32 %v3049, %v3103
  %v3121 = vadd.f32 %v3052, %v3103
  %v3122 = vadd.f32 %v3055, %v3103
  %v3123 = vadd.f32 %v3058, %v3103
  %v3124 = vadd.f32 %v3061, %v3103
  %v3125 = vadd.f32 %v3064, %v3103
  %v3126 = vadd.f32 %v3067, %v3103
  %v3127 = vadd.f32 %v3070, %v3103
  %v3128 = vadd.f32 %v3073, %v3103
  %v3129 = vadd.f32 %v3076, %v3103
  %v3130 = vadd.f32 %v3079, %v3103
  %v3131 = vadd.f32 %v3082, %v3103
  %v3132 = vadd.f32 %v3085, %v3103
  %v3133 = vadd.f32 %v3088, %v3103
  %v3134 = vadd.f32 %v3091, %v3103
  %v3135 = vadd.f32 %v3094, %v3103
  %v3136 = vadd.f32 %v3097, %v3103
  %vm3137 = vcmask 7168
  %3138 = vst.msk [vmem:[%s13] sm:$0xff] %vm3137, %v3105
  %3139 = vst.msk [vmem:[%s13 + $0x8] sm:$0xff] %vm3137, %v3106
  %3140 = vst.msk [vmem:[%s13 + $0x10] sm:$0xff] %vm3137, %v3107
  %3141 = vst.msk [vmem:[%s13 + $0x18] sm:$0xff] %vm3137, %v3108
  %3142 = vst.msk [vmem:[%s13 + $0x20] sm:$0xff] %vm3137, %v3109
  %3143 = vst.msk [vmem:[%s13 + $0x28] sm:$0xff] %vm3137, %v3110
  %3144 = vst.msk [vmem:[%s13 + $0x30] sm:$0xff] %vm3137, %v3111
  %3145 = vst.msk [vmem:[%s13 + $0x38] sm:$0xff] %vm3137, %v3112
  %3146 = vst.msk [vmem:[%s13 + $0x40] sm:$0xff] %vm3137, %v3113
  %3147 = vst.msk [vmem:[%s13 + $0x48] sm:$0xff] %vm3137, %v3114
  %3148 = vst.msk [vmem:[%s13 + $0x50] sm:$0xff] %vm3137, %v3115
  %3149 = vst.msk [vmem:[%s13 + $0x58] sm:$0xff] %vm3137, %v3116
  %3150 = vst.msk [vmem:[%s13 + $0x60] sm:$0xff] %vm3137, %v3117
  %3151 = vst.msk [vmem:[%s13 + $0x68] sm:$0xff] %vm3137, %v3118
  %3152 = vst.msk [vmem:[%s13 + $0x70] sm:$0xff] %vm3137, %v3119
  %3153 = vst.msk [vmem:[%s13 + $0x78] sm:$0xff] %vm3137, %v3120
  %3154 = vst.msk [vmem:[%s13 + $0x80] sm:$0xff] %vm3137, %v3121
  %3155 = vst.msk [vmem:[%s13 + $0x88] sm:$0xff] %vm3137, %v3122
  %3156 = vst.msk [vmem:[%s13 + $0x90] sm:$0xff] %vm3137, %v3123
  %3157 = vst.msk [vmem:[%s13 + $0x98] sm:$0xff] %vm3137, %v3124
  %3158 = vst.msk [vmem:[%s13 + $0xa0] sm:$0xff] %vm3137, %v3125
  %3159 = vst.msk [vmem:[%s13 + $0xa8] sm:$0xff] %vm3137, %v3126
  %3160 = vst.msk [vmem:[%s13 + $0xb0] sm:$0xff] %vm3137, %v3127
  %3161 = vst.msk [vmem:[%s13 + $0xb8] sm:$0xff] %vm3137, %v3128
  %3162 = vst.msk [vmem:[%s13 + $0xc0] sm:$0xff] %vm3137, %v3129
  %3163 = vst.msk [vmem:[%s13 + $0xc8] sm:$0xff] %vm3137, %v3130
  %3164 = vst.msk [vmem:[%s13 + $0xd0] sm:$0xff] %vm3137, %v3131
  %3165 = vst.msk [vmem:[%s13 + $0xd8] sm:$0xff] %vm3137, %v3132
  %3166 = vst.msk [vmem:[%s13 + $0xe0] sm:$0xff] %vm3137, %v3133
  %3167 = vst.msk [vmem:[%s13 + $0xe8] sm:$0xff] %vm3137, %v3134
  %3168 = vst.msk [vmem:[%s13 + $0xf0] sm:$0xff] %vm3137, %v3135
  %3169 = vst.msk [vmem:[%s13 + $0xf8] sm:$0xff] %vm3137, %v3136
  // Predicated region
  $region54: #{ql_forward.1} parent=0 // pred_check
    _
  $region55: #{ql_forward.1} parent=0 // pred_check_branch
    %3171 = sbr.rel (0) target = $region57
  $region56: #{ql_forward.1} parent=0 // pred_region
    _
  $region57: #{ql_forward.1} parent=0 // pred_fallthru
    _
  // Predicated region
  $region58: #{ql_forward.1} parent=0 // pred_check
    _
  $region59: #{ql_forward.1} parent=0 // pred_check_branch
    %3173 = sbr.rel (0) target = $region61
  $region60: #{ql_forward.1} parent=0 // pred_region
    _
  $region61: #{ql_forward.1} parent=0 // pred_fallthru
    _

</llo_original>
